<compile_context>
chip_gen: v5e
topology: v5e:2x2
jax: 0.10.0
libtpu: 0.0.40
codegen_flags: <defaults>
</compile_context>

<pallas_src>
import functools

import jax
import jax.numpy as jnp
from jax.experimental import pallas as pl
from jax.experimental.pallas import tpu as pltpu

IN_DIM, H1, H2, OUT_DIM = 28 * 28, 600, 300, 10
H1P, H2P, OUT_PAD = 640, 384, 128          # lane-aligned padded widths


def _round_up(n, m):
    return ((n + m - 1) // m) * m


def _mlp_kernel(x_ref, w1_ref, b1_ref, w2_ref, b2_ref, w3_ref, b3_ref, o_ref,
                *, n_chunks):
    """One batch tile: 3 matmuls (bf16 inputs, f32 accumulation) + epilogues.

    The tile is processed in `n_chunks` row sub-tiles so the MXU matmuls of
    chunk j+1 can overlap the VPU epilogue (bias + ReLU + bf16 cast) of
    chunk j.
    """
    rows = x_ref.shape[0] // n_chunks
    for j in range(n_chunks):                       # static unroll
        r0 = j * rows
        x = x_ref[pl.ds(r0, rows), :].astype(jnp.bfloat16)     # f32 -> bf16 in-kernel
        h1 = jnp.dot(x, w1_ref[...], preferred_element_type=jnp.float32)
        h1 = jnp.maximum(h1 + b1_ref[...], 0.0).astype(jnp.bfloat16)
        h2 = jnp.dot(h1, w2_ref[...], preferred_element_type=jnp.float32)
        h2 = jnp.maximum(h2 + b2_ref[...], 0.0).astype(jnp.bfloat16)
        out = jnp.dot(h2, w3_ref[...], preferred_element_type=jnp.float32)
        o_ref[pl.ds(r0, rows), :] = (out + b3_ref[...]).astype(o_ref.dtype)


def pack_params(params):
    """Pre-pack (once) the params for the kernel.

    params = (w1t, b1, w2t, b2, w3t, b3) with weights stored (in, out)
    (i.e. nn.Linear.weight transposed).  Weights are cast to bf16 and
    zero-padded to lane-aligned shapes; biases stay f32 as (1, N).
    """
    w1t, b1, w2t, b2, w3t, b3 = params
    w1p = jnp.zeros((IN_DIM, H1P), jnp.bfloat16).at[:, :H1].set(w1t.astype(jnp.bfloat16))
    w2p = jnp.zeros((H1P, H2P), jnp.bfloat16).at[:H1, :H2].set(w2t.astype(jnp.bfloat16))
    w3p = jnp.zeros((H2P, OUT_PAD), jnp.bfloat16).at[:H2, :OUT_DIM].set(w3t.astype(jnp.bfloat16))
    b1p = jnp.zeros((1, H1P), jnp.float32).at[:, :H1].set(b1.astype(jnp.float32))
    b2p = jnp.zeros((1, H2P), jnp.float32).at[:, :H2].set(b2.astype(jnp.float32))
    b3p = jnp.zeros((1, OUT_PAD), jnp.float32).at[:, :OUT_DIM].set(b3.astype(jnp.float32))
    return (w1p, b1p, w2p, b2p, w3p, b3p)


_STEP_OVERHEAD_ROWS = 128   # ~0.35us per grid step expressed in row-equivalents


def _choose_tb(B, tb_max):
    """Batch-tile size: large (multiple of 128), >=2 grid steps when B>128
    (so both v7x TensorCores get work), padding waste vs. step overhead."""
    B = max(int(B), 1)
    if B <= 128:
        return _round_up(B, 8)                      # single small tile
    best_tb, best_score = 128, None
    for tb in (128, 256, 512, 1024, 2048):
        if tb > tb_max:
            break
        bp = _round_up(B, tb)
        steps = bp // tb
        if steps < 2:
            continue                                # would idle a v7x core
        score = bp + _STEP_OVERHEAD_ROWS * steps    # padded rows + step overhead
        if best_score is None or score <= best_score:   # ties -> larger tile
            best_tb, best_score = tb, score
    return best_tb


@functools.partial(jax.jit, static_argnames=("tb_max",))
def perceptron_600_300_forward(x, packed_params, tb_max=1024):
    """x: any shape whose trailing dims flatten to 784 (e.g. (B, 1, 28, 28)).

    packed_params: output of pack_params().  Returns (B, 10) float32.
    """
    w1p, b1p, w2p, b2p, w3p, b3p = packed_params
    x2 = x.reshape(-1, IN_DIM).astype(jnp.float32)
    B = x2.shape[0]

    TB = _choose_tb(B, tb_max)
    Bp = _round_up(B, TB)
    if Bp != B:
        x2 = jnp.pad(x2, ((0, Bp - B), (0, 0)))     # fused into one pass under jit
    grid = (Bp // TB,)

    if TB % 512 == 0:
        n_chunks = 4
    elif TB % 256 == 0:
        n_chunks = 2
    else:
        n_chunks = 1

    flops = 2 * Bp * (IN_DIM * H1P + H1P * H2P + H2P * OUT_PAD)
    bytes_accessed = (
        Bp * IN_DIM * 4                                     # x (f32, cast in-kernel)
        + (IN_DIM * H1P + H1P * H2P + H2P * OUT_PAD) * 2    # weights (bf16, loaded once)
        + (H1P + H2P + OUT_PAD) * 4                         # biases (f32)
        + Bp * OUT_PAD * 2                                  # output (bf16)
    )

    out = pl.pallas_call(
        functools.partial(_mlp_kernel, n_chunks=n_chunks),
        out_shape=jax.ShapeDtypeStruct((Bp, OUT_PAD), jnp.bfloat16),
        grid=grid,
        in_specs=[
            pl.BlockSpec((TB, IN_DIM), lambda i: (i, 0)),   # x tile (pipelined)
            pl.BlockSpec((IN_DIM, H1P), lambda i: (0, 0)),  # weights / biases resident
            pl.BlockSpec((1, H1P), lambda i: (0, 0)),
            pl.BlockSpec((H1P, H2P), lambda i: (0, 0)),
            pl.BlockSpec((1, H2P), lambda i: (0, 0)),
            pl.BlockSpec((H2P, OUT_PAD), lambda i: (0, 0)),
            pl.BlockSpec((1, OUT_PAD), lambda i: (0, 0)),
        ],
        out_specs=pl.BlockSpec((TB, OUT_PAD), lambda i: (i, 0)),
        compiler_params=pltpu.CompilerParams(
            dimension_semantics=("parallel",),              # megacore split on v7x
            vmem_limit_bytes=48 * 1024 * 1024,              # headroom over v5e 16 MiB default
        ),
        cost_estimate=pl.CostEstimate(
            flops=flops, transcendentals=0, bytes_accessed=bytes_accessed),
    )(x2, w1p, b1p, w2p, b2p, w3p, b3p)

    return out[:B, :OUT_DIM].astype(jnp.float32)


def init_params(key):
    """Deterministic init mirroring PyTorch nn.Linear default (U[-1/sqrt(fan_in), 1/sqrt(fan_in)])."""
    dims = [(IN_DIM, H1), (H1, H2), (H2, OUT_DIM)]
    params = []
    for fan_in, fan_out in dims:
        kw, kb, key = jax.random.split(key, 3)
        bound = 1.0 / (fan_in ** 0.5)
        # stored directly as (in, out) == PyTorch weight (out, in) transposed
        w_t = jax.random.uniform(kw, (fan_in, fan_out), jnp.float32, -bound, bound)
        b = jax.random.uniform(kb, (fan_out,), jnp.float32, -bound, bound)
        params.extend([w_t, b])
    return tuple(params)


def _ref_forward_bf16(x, params):
    """Pure-JAX reference using the same bf16-input / f32-accumulate recipe."""
    w1t, b1, w2t, b2, w3t, b3 = params
    xr = x.reshape(-1, IN_DIM).astype(jnp.bfloat16)
    h = jnp.dot(xr, w1t.astype(jnp.bfloat16), preferred_element_type=jnp.float32) + b1
    h = jnp.maximum(h, 0.0).astype(jnp.bfloat16)
    h = jnp.dot(h, w2t.astype(jnp.bfloat16), preferred_element_type=jnp.float32) + b2
    h = jnp.maximum(h, 0.0).astype(jnp.bfloat16)
    return jnp.dot(h, w3t.astype(jnp.bfloat16), preferred_element_type=jnp.float32) + b3


def _ref_forward_f32(x, params):
    w1t, b1, w2t, b2, w3t, b3 = params
    xr = x.reshape(-1, IN_DIM).astype(jnp.float32)
    h = jnp.maximum(xr @ w1t + b1, 0.0)
    h = jnp.maximum(h @ w2t + b2, 0.0)
    return h @ w3t + b3


if __name__ == "__main__":
    key = jax.random.PRNGKey(0)
    kp, kx, kx2 = jax.random.split(key, 3)
    params = init_params(kp)
    packed = pack_params(params)          # packed once, reused for every call

    # MNIST-like input: batch=2, NCHW (2, 1, 28, 28); forward flattens to (2, 784)
    x = jax.random.normal(kx, (2, 1, 28, 28), dtype=jnp.float32)
    out = perceptron_600_300_forward(x, packed)
    jax.block_until_ready(out)
    assert out.shape == (2, 10)
    assert out.dtype == jnp.float32
    # bf16 output slab adds one rounding on logits accumulated in f32.
    assert jnp.allclose(out, _ref_forward_bf16(x, params), atol=8e-3, rtol=2e-2)
    assert jnp.allclose(out, _ref_forward_f32(x, params), atol=8e-2, rtol=8e-2)

    # Multi-tile batch grid: 520 rows -> adaptive TB (>=2 grid steps for v7x).
    x_big = jax.random.normal(kx2, (520, 1, 28, 28), dtype=jnp.float32)
    out_big = perceptron_600_300_forward(x_big, packed)
    jax.block_until_ready(out_big)
    assert out_big.shape == (520, 10)
    assert jnp.allclose(out_big, _ref_forward_bf16(x_big, params), atol=8e-3, rtol=2e-2)

    print("KERNEL_OK")
</pallas_src>

<mosaic_0001>
module attributes {stable_mosaic.version = 11 : i64} {
  func.func @_mlp_kernel(%arg0: i32, %arg1: memref<8x784xf32, #tpu.memory_space<vmem>>, %arg2: memref<784x640xbf16, #tpu.memory_space<vmem>>, %arg3: memref<1x640xf32, #tpu.memory_space<vmem>>, %arg4: memref<640x384xbf16, #tpu.memory_space<vmem>>, %arg5: memref<1x384xf32, #tpu.memory_space<vmem>>, %arg6: memref<384x128xbf16, #tpu.memory_space<vmem>>, %arg7: memref<1x128xf32, #tpu.memory_space<vmem>>, %arg8: memref<8x128xbf16, #tpu.memory_space<vmem>>) attributes {dimension_semantics = [#tpu.dimension_semantics<parallel>], iteration_bounds = array<i64: 1>, scalar_prefetch = 0 : i64, scratch_operands = 0 : i64, tpu.core_type = #tpu.core_type<tc>, window_params = [{transform_indices = @transform_0, window_bounds = array<i64: 8, 784>}, {pipeline_mode = #tpu.pipeline_mode<synchronous>, transform_indices = @transform_1, window_bounds = array<i64: 784, 640>}, {pipeline_mode = #tpu.pipeline_mode<synchronous>, transform_indices = @transform_2, window_bounds = array<i64: 1, 640>}, {pipeline_mode = #tpu.pipeline_mode<synchronous>, transform_indices = @transform_3, window_bounds = array<i64: 640, 384>}, {pipeline_mode = #tpu.pipeline_mode<synchronous>, transform_indices = @transform_4, window_bounds = array<i64: 1, 384>}, {pipeline_mode = #tpu.pipeline_mode<synchronous>, transform_indices = @transform_5, window_bounds = array<i64: 384, 128>}, {pipeline_mode = #tpu.pipeline_mode<synchronous>, transform_indices = @transform_6, window_bounds = array<i64: 1, 128>}, {transform_indices = @transform_7, window_bounds = array<i64: 8, 128>}]} {
    %c0 = arith.constant 0 : index
    %c0_0 = arith.constant 0 : index
    %0 = vector.load %arg1[%c0, %c0_0] : memref<8x784xf32, #tpu.memory_space<vmem>>, vector<8x784xf32>
    %1 = arith.truncf %0 : vector<8x784xf32> to vector<8x784xbf16>
    %c0_1 = arith.constant 0 : index
    %c0_2 = arith.constant 0 : index
    %2 = vector.load %arg2[%c0_1, %c0_2] : memref<784x640xbf16, #tpu.memory_space<vmem>>, vector<784x640xbf16>
    %cst = arith.constant dense<0.000000e+00> : vector<8x640xf32>
    %3 = tpu.matmul %1, %2, %cst {dimension_numbers = #tpu.dot_dimension_numbers<[1], [0], [0], [1], [0, 0, 1, 1], [], []>} : vector<8x784xbf16>, vector<784x640xbf16>, vector<8x640xf32> -> vector<8x640xf32>
    %c0_3 = arith.constant 0 : index
    %c0_4 = arith.constant 0 : index
    %4 = vector.load %arg3[%c0_3, %c0_4] : memref<1x640xf32, #tpu.memory_space<vmem>>, vector<1x640xf32>
    %5 = vector.broadcast %4 : vector<1x640xf32> to vector<8x640xf32>
    %6 = arith.addf %3, %5 : vector<8x640xf32>
    %cst_5 = arith.constant 0.000000e+00 : f32
    %7 = vector.broadcast %cst_5 : f32 to vector<8x640xf32>
    %8 = arith.maximumf %6, %7 : vector<8x640xf32>
    %9 = arith.truncf %8 : vector<8x640xf32> to vector<8x640xbf16>
    %c0_6 = arith.constant 0 : index
    %c0_7 = arith.constant 0 : index
    %10 = vector.load %arg4[%c0_6, %c0_7] : memref<640x384xbf16, #tpu.memory_space<vmem>>, vector<640x384xbf16>
    %cst_8 = arith.constant dense<0.000000e+00> : vector<8x384xf32>
    %11 = tpu.matmul %9, %10, %cst_8 {dimension_numbers = #tpu.dot_dimension_numbers<[1], [0], [0], [1], [0, 0, 1, 1], [], []>} : vector<8x640xbf16>, vector<640x384xbf16>, vector<8x384xf32> -> vector<8x384xf32>
    %c0_9 = arith.constant 0 : index
    %c0_10 = arith.constant 0 : index
    %12 = vector.load %arg5[%c0_9, %c0_10] : memref<1x384xf32, #tpu.memory_space<vmem>>, vector<1x384xf32>
    %13 = vector.broadcast %12 : vector<1x384xf32> to vector<8x384xf32>
    %14 = arith.addf %11, %13 : vector<8x384xf32>
    %cst_11 = arith.constant 0.000000e+00 : f32
    %15 = vector.broadcast %cst_11 : f32 to vector<8x384xf32>
    %16 = arith.maximumf %14, %15 : vector<8x384xf32>
    %17 = arith.truncf %16 : vector<8x384xf32> to vector<8x384xbf16>
    %c0_12 = arith.constant 0 : index
    %c0_13 = arith.constant 0 : index
    %18 = vector.load %arg6[%c0_12, %c0_13] : memref<384x128xbf16, #tpu.memory_space<vmem>>, vector<384x128xbf16>
    %cst_14 = arith.constant dense<0.000000e+00> : vector<8x128xf32>
    %19 = tpu.matmul %17, %18, %cst_14 {dimension_numbers = #tpu.dot_dimension_numbers<[1], [0], [0], [1], [0, 0, 1, 1], [], []>} : vector<8x384xbf16>, vector<384x128xbf16>, vector<8x128xf32> -> vector<8x128xf32>
    %c0_15 = arith.constant 0 : index
    %c0_16 = arith.constant 0 : index
    %20 = vector.load %arg7[%c0_15, %c0_16] : memref<1x128xf32, #tpu.memory_space<vmem>>, vector<1x128xf32>
    %21 = vector.broadcast %20 : vector<1x128xf32> to vector<8x128xf32>
    %22 = arith.addf %19, %21 : vector<8x128xf32>
    %23 = arith.truncf %22 : vector<8x128xf32> to vector<8x128xbf16>
    %c0_17 = arith.constant 0 : index
    %c0_18 = arith.constant 0 : index
    %24 = vector.load %arg8[%c0_17, %c0_18] : memref<8x128xbf16, #tpu.memory_space<vmem>>, vector<8x128xbf16>
    tpu.vector_store %arg8[%c0_17, %c0_18], %23 {strides = array<i32>} : memref<8x128xbf16, #tpu.memory_space<vmem>>, vector<8x128xbf16>,
    return
  }
  func.func @transform_0(%arg0: i32) -> (i32, i32) {
    %c0_i32 = arith.constant 0 : i32
    %c0_i32_0 = arith.constant 0 : i32
    return %arg0, %c0_i32 : i32, i32
  }
  func.func @transform_1(%arg0: i32) -> (i32, i32) {
    %c0_i32 = arith.constant 0 : i32
    %c0_i32_0 = arith.constant 0 : i32
    %c0_i32_1 = arith.constant 0 : i32
    return %c0_i32, %c0_i32_0 : i32, i32
  }
  func.func @transform_2(%arg0: i32) -> (i32, i32) {
    %c0_i32 = arith.constant 0 : i32
    %c0_i32_0 = arith.constant 0 : i32
    %c0_i32_1 = arith.constant 0 : i32
    return %c0_i32, %c0_i32_0 : i32, i32
  }
  func.func @transform_3(%arg0: i32) -> (i32, i32) {
    %c0_i32 = arith.constant 0 : i32
    %c0_i32_0 = arith.constant 0 : i32
    %c0_i32_1 = arith.constant 0 : i32
    return %c0_i32, %c0_i32_0 : i32, i32
  }
  func.func @transform_4(%arg0: i32) -> (i32, i32) {
    %c0_i32 = arith.constant 0 : i32
    %c0_i32_0 = arith.constant 0 : i32
    %c0_i32_1 = arith.constant 0 : i32
    return %c0_i32, %c0_i32_0 : i32, i32
  }
  func.func @transform_5(%arg0: i32) -> (i32, i32) {
    %c0_i32 = arith.constant 0 : i32
    %c0_i32_0 = arith.constant 0 : i32
    %c0_i32_1 = arith.constant 0 : i32
    return %c0_i32, %c0_i32_0 : i32, i32
  }
  func.func @transform_6(%arg0: i32) -> (i32, i32) {
    %c0_i32 = arith.constant 0 : i32
    %c0_i32_0 = arith.constant 0 : i32
    %c0_i32_1 = arith.constant 0 : i32
    return %c0_i32, %c0_i32_0 : i32, i32
  }
  func.func @transform_7(%arg0: i32) -> (i32, i32) {
    %c0_i32 = arith.constant 0 : i32
    %c0_i32_0 = arith.constant 0 : i32
    return %arg0, %c0_i32 : i32, i32
  }
}

</mosaic_0001>

<llo_original>
// kernel: perceptron_600_300_forward.1
$region0: #{perceptron_600_300_forward.1}
  #allocation0 [shape = 'u32[]', space=smem, size = 0x4, offset = 0x4, fixed_abs, tag = 'smem constant byte address 0x4 - core index']
  #allocation1 [shape = 'u32[72,128]{1,0:T(1,128)}', space=vmem, size = 0x9000, scoped, tag = 'internal scratch']
  %s0 = inlined_call_operand.vmem [shape: f32[8,784], index: 0, kind: input, shape index: {}]
  %s1 = inlined_call_operand.hbm [shape: bf16[784,640], index: 1, kind: input, shape index: {}]
  %s2 = inlined_call_operand.vmem [shape: f32[1,640], index: 2, kind: input, shape index: {}]
  %s3 = inlined_call_operand.hbm [shape: bf16[640,384], index: 3, kind: input, shape index: {}]
  %s4 = inlined_call_operand.vmem [shape: f32[1,384], index: 4, kind: input, shape index: {}]
  %s5 = inlined_call_operand.vmem [shape: bf16[384,128], index: 5, kind: input, shape index: {}]
  %s6 = inlined_call_operand.vmem [shape: f32[1,128], index: 6, kind: input, shape index: {}]
  %s7 = inlined_call_operand.vmem [shape: bf16[8,128], index: 7, kind: output, shape index: {}]
  %s8 = sld [smem:[#allocation0]]
  $region46: #{perceptron_600_300_forward.1} parent=0
    _
  %s10 = ssub.s32 1, %s8
  %s11 = scalar_select 0, %s10, %s8
  $region1: #{perceptron_600_300_forward.1} parent=0
    #allocation2 [shape = 'u8[1003520]{0}', space=vmem, size = 0xf5000, scoped, tag = 'input window, operand 1, single buffered']
    #allocation3 [shape = 's32[1]{0}', space=sflag, size = 0x4, scoped, tag = 'scoped memory for perceptron_600_300_forward.1']
    #allocation4 [shape = 'u8[491520]{0}', space=vmem, size = 0x78000, scoped, tag = 'input window, operand 3, single buffered']
    #allocation5 [shape = 's32[1]{0}', space=sflag, size = 0x4, scoped, tag = 'scoped memory for perceptron_600_300_forward.1']
    %12 = vsyncpa [#allocation3], 0
    %13 = vsyncpa [#allocation5], 0
    // Predicated region
    $region2: #{perceptron_600_300_forward.1} parent=1 // pred_check
      _
    $region3: #{perceptron_600_300_forward.1} parent=1 // pred_check_branch
      %15 = sbr.rel (0) target = $region5
    $region4: #{perceptron_600_300_forward.1} parent=1 // pred_region
      _
    $region5: #{perceptron_600_300_forward.1} parent=1 // pred_fallthru
      _
    // Predicated region
    $region6: #{perceptron_600_300_forward.1} parent=1 // pred_check
      _
    $region7: #{perceptron_600_300_forward.1} parent=1 // pred_check_branch
      %17 = sbr.rel (0) target = $region9
    $region8: #{perceptron_600_300_forward.1} parent=1 // pred_region
      %19 = vsyncadd [#allocation3], 0
      %s20 = sshll.u32 %s1, 4
      %s21 = int_to_ptr.hbm [resolvable:$true] %s20
      %s22 = sshll.u32 [#allocation2], 4
      %s23 = int_to_ptr.vmem [resolvable:$true] %s22
      %28 = dma.hbm_to_vmem [thread:$0]  %s21, 31360, %s23, [#allocation3], 320, 320, 20
    $region9: #{perceptron_600_300_forward.1} parent=1 // pred_fallthru
      _
    // Predicated region
    $region10: #{perceptron_600_300_forward.1} parent=1 // pred_check
      _
    $region11: #{perceptron_600_300_forward.1} parent=1 // pred_check_branch
      %30 = sbr.rel (0) target = $region13
    $region12: #{perceptron_600_300_forward.1} parent=1 // pred_region
      _
    $region13: #{perceptron_600_300_forward.1} parent=1 // pred_fallthru
      _
    // Predicated region
    $region14: #{perceptron_600_300_forward.1} parent=1 // pred_check
      _
    $region15: #{perceptron_600_300_forward.1} parent=1 // pred_check_branch
      %32 = sbr.rel (0) target = $region17
    $region16: #{perceptron_600_300_forward.1} parent=1 // pred_region
      %34 = vsyncadd [#allocation5], 0
      %s35 = sshll.u32 %s3, 4
      %s36 = int_to_ptr.hbm [resolvable:$true] %s35
      %s37 = sshll.u32 [#allocation4], 4
      %s38 = int_to_ptr.vmem [resolvable:$true] %s37
      %43 = dma.hbm_to_vmem [thread:$0]  %s36, 15360, %s38, [#allocation5], 192, 192, 12
    $region17: #{perceptron_600_300_forward.1} parent=1 // pred_fallthru
      _
    // Predicated region
    $region18: #{perceptron_600_300_forward.1} parent=1 // pred_check
      _
    $region19: #{perceptron_600_300_forward.1} parent=1 // pred_check_branch
      %45 = sbr.rel (0) target = $region21
    $region20: #{perceptron_600_300_forward.1} parent=1 // pred_region
      _
    $region21: #{perceptron_600_300_forward.1} parent=1 // pred_fallthru
      _
    // Predicated region
    $region22: #{perceptron_600_300_forward.1} parent=1 // pred_check
      _
    $region23: #{perceptron_600_300_forward.1} parent=1 // pred_check_branch
      %47 = sbr.rel (0) target = $region25
    $region24: #{perceptron_600_300_forward.1} parent=1 // pred_region
      _
    $region25: #{perceptron_600_300_forward.1} parent=1 // pred_fallthru
      _
    // Predicated region
    $region26: #{perceptron_600_300_forward.1} parent=1 // pred_check
      _
    $region27: #{perceptron_600_300_forward.1} parent=1 // pred_check_branch
      %49 = sbr.rel (0) target = $region29
    $region28: #{perceptron_600_300_forward.1} parent=1 // pred_region
      _
    $region29: #{perceptron_600_300_forward.1} parent=1 // pred_fallthru
      _
    // Predicated region
    $region30: #{perceptron_600_300_forward.1} parent=1 // pred_check
      _
    $region31: #{perceptron_600_300_forward.1} parent=1 // pred_check_branch
      %51 = sbr.rel (0) target = $region33
    $region32: #{perceptron_600_300_forward.1} parent=1 // pred_region
      %53 = dma.done [#allocation3], 31360
    $region33: #{perceptron_600_300_forward.1} parent=1 // pred_fallthru
      _
    // Predicated region
    $region34: #{perceptron_600_300_forward.1} parent=1 // pred_check
      _
    $region35: #{perceptron_600_300_forward.1} parent=1 // pred_check_branch
      %55 = sbr.rel (0) target = $region37
    $region36: #{perceptron_600_300_forward.1} parent=1 // pred_region
      %57 = dma.done [#allocation5], 15360
    $region37: #{perceptron_600_300_forward.1} parent=1 // pred_fallthru
      _
    %v59 = vld [vmem:[%s0] sm:$0xff]
    %v60 = vld [vmem:[%s0 + $0x8] sm:$0xff]
    %v61 = vld [vmem:[%s0 + $0x10] sm:$0xff]
    %v62 = vld [vmem:[%s0 + $0x18] sm:$0xff]
    %v63 = vld [vmem:[%s0 + $0x20] sm:$0xff]
    %v64 = vld [vmem:[%s0 + $0x28] sm:$0xff]
    %v65 = vld [vmem:[%s0 + $0x30] sm:$0xff]
    %v66 = vpack.c.bf16 %v59, %v59
    %v67 = vpack.c.bf16 %v60, %v60
    %v68 = vpack.c.bf16 %v61, %v61
    %v69 = vpack.c.bf16 %v62, %v62
    %v70 = vpack.c.bf16 %v63, %v63
    %v71 = vpack.c.bf16 %v64, %v64
    %v72 = vpack.c.bf16 %v65, %v65
    %v73 = vld [vmem:[#allocation2] sm:$0xff]
    %v74 = vld [vmem:[#allocation2 + $0x8] sm:$0xff]
    %v75 = vld [vmem:[#allocation2 + $0x10] sm:$0xf]
    %v76 = vld [vmem:[#allocation2 + $0x14] sm:$0xff]
    %v77 = vld [vmem:[#allocation2 + $0x1c] sm:$0xff]
    %v78 = vld [vmem:[#allocation2 + $0x24] sm:$0xf]
    %v79 = vld [vmem:[#allocation2 + $0x28] sm:$0xff]
    %v80 = vld [vmem:[#allocation2 + $0x30] sm:$0xff]
    %v81 = vld [vmem:[#allocation2 + $0x38] sm:$0xf]
    %v82 = vld [vmem:[#allocation2 + $0x3c] sm:$0xff]
    %v83 = vld [vmem:[#allocation2 + $0x44] sm:$0xff]
    %v84 = vld [vmem:[#allocation2 + $0x4c] sm:$0xf]
    %v85 = vld [vmem:[#allocation2 + $0x50] sm:$0xff]
    %v86 = vld [vmem:[#allocation2 + $0x58] sm:$0xff]
    %v87 = vld [vmem:[#allocation2 + $0x60] sm:$0xf]
    %v88 = vld [vmem:[#allocation2 + $0x64] sm:$0xff]
    %v89 = vld [vmem:[#allocation2 + $0x6c] sm:$0xff]
    %v90 = vld [vmem:[#allocation2 + $0x74] sm:$0xf]
    %v91 = vld [vmem:[#allocation2 + $0x78] sm:$0xff]
    %v92 = vld [vmem:[#allocation2 + $0x80] sm:$0xff]
    %v93 = vld [vmem:[#allocation2 + $0x88] sm:$0xf]
    %v94 = vld [vmem:[#allocation2 + $0x8c] sm:$0xff]
    %v95 = vld [vmem:[#allocation2 + $0x94] sm:$0xff]
    %v96 = vld [vmem:[#allocation2 + $0x9c] sm:$0xf]
    %v97 = vld [vmem:[#allocation2 + $0xa0] sm:$0xff]
    %v98 = vld [vmem:[#allocation2 + $0xa8] sm:$0xff]
    %v99 = vld [vmem:[#allocation2 + $0xb0] sm:$0xf]
    %v100 = vld [vmem:[#allocation2 + $0xb4] sm:$0xff]
    %v101 = vld [vmem:[#allocation2 + $0xbc] sm:$0xff]
    %v102 = vld [vmem:[#allocation2 + $0xc4] sm:$0xf]
    %v103 = vld [vmem:[#allocation2 + $0xc8] sm:$0xff]
    %v104 = vld [vmem:[#allocation2 + $0xd0] sm:$0xff]
    %v105 = vld [vmem:[#allocation2 + $0xd8] sm:$0xf]
    %v106 = vld [vmem:[#allocation2 + $0xdc] sm:$0xff]
    %v107 = vld [vmem:[#allocation2 + $0xe4] sm:$0xff]
    %v108 = vld [vmem:[#allocation2 + $0xec] sm:$0xf]
    %v109 = vld [vmem:[#allocation2 + $0xf0] sm:$0xff]
    %v110 = vld [vmem:[#allocation2 + $0xf8] sm:$0xff]
    %v111 = vld [vmem:[#allocation2 + $0x100] sm:$0xf]
    %v112 = vld [vmem:[#allocation2 + $0x104] sm:$0xff]
    %v113 = vld [vmem:[#allocation2 + $0x10c] sm:$0xff]
    %v114 = vld [vmem:[#allocation2 + $0x114] sm:$0xf]
    %v115 = vld [vmem:[#allocation2 + $0x118] sm:$0xff]
    %v116 = vld [vmem:[#allocation2 + $0x120] sm:$0xff]
    %v117 = vld [vmem:[#allocation2 + $0x128] sm:$0xf]
    %v118 = vld [vmem:[#allocation2 + $0x12c] sm:$0xff]
    %v119 = vld [vmem:[#allocation2 + $0x134] sm:$0xff]
    %v120 = vld [vmem:[#allocation2 + $0x13c] sm:$0xf]
    %v121 = vld [vmem:[#allocation2 + $0x140] sm:$0xff]
    %v122 = vld [vmem:[#allocation2 + $0x148] sm:$0xff]
    %v123 = vld [vmem:[#allocation2 + $0x150] sm:$0xf]
    %v124 = vld [vmem:[#allocation2 + $0x154] sm:$0xff]
    %v125 = vld [vmem:[#allocation2 + $0x15c] sm:$0xff]
    %v126 = vld [vmem:[#allocation2 + $0x164] sm:$0xf]
    %v127 = vld [vmem:[#allocation2 + $0x168] sm:$0xff]
    %v128 = vld [vmem:[#allocation2 + $0x170] sm:$0xff]
    %v129 = vld [vmem:[#allocation2 + $0x178] sm:$0xf]
    %v130 = vld [vmem:[#allocation2 + $0x17c] sm:$0xff]
    %v131 = vld [vmem:[#allocation2 + $0x184] sm:$0xff]
    %v132 = vld [vmem:[#allocation2 + $0x18c] sm:$0xf]
    %v133 = vld [vmem:[#allocation2 + $0x190] sm:$0xff]
    %v134 = vld [vmem:[#allocation2 + $0x198] sm:$0xff]
    %v135 = vld [vmem:[#allocation2 + $0x1a0] sm:$0xf]
    %v136 = vld [vmem:[#allocation2 + $0x1a4] sm:$0xff]
    %v137 = vld [vmem:[#allocation2 + $0x1ac] sm:$0xff]
    %v138 = vld [vmem:[#allocation2 + $0x1b4] sm:$0xf]
    %v139 = vld [vmem:[#allocation2 + $0x1b8] sm:$0xff]
    %v140 = vld [vmem:[#allocation2 + $0x1c0] sm:$0xff]
    %v141 = vld [vmem:[#allocation2 + $0x1c8] sm:$0xf]
    %v142 = vld [vmem:[#allocation2 + $0x1cc] sm:$0xff]
    %v143 = vld [vmem:[#allocation2 + $0x1d4] sm:$0xff]
    %v144 = vld [vmem:[#allocation2 + $0x1dc] sm:$0xf]
    %v145 = vld [vmem:[#allocation2 + $0x1e0] sm:$0xff]
    %v146 = vld [vmem:[#allocation2 + $0x1e8] sm:$0xff]
    %v147 = vld [vmem:[#allocation2 + $0x1f0] sm:$0xf]
    %v148 = vld [vmem:[#allocation2 + $0x1f4] sm:$0xff]
    %v149 = vld [vmem:[#allocation2 + $0x1fc] sm:$0xff]
    %v150 = vld [vmem:[#allocation2 + $0x204] sm:$0xf]
    %v151 = vld [vmem:[#allocation2 + $0x208] sm:$0xff]
    %v152 = vld [vmem:[#allocation2 + $0x210] sm:$0xff]
    %v153 = vld [vmem:[#allocation2 + $0x218] sm:$0xf]
    %v154 = vld [vmem:[#allocation2 + $0x21c] sm:$0xff]
    %v155 = vld [vmem:[#allocation2 + $0x224] sm:$0xff]
    %v156 = vld [vmem:[#allocation2 + $0x22c] sm:$0xf]
    %v157 = vld [vmem:[#allocation2 + $0x230] sm:$0xff]
    %v158 = vld [vmem:[#allocation2 + $0x238] sm:$0xff]
    %v159 = vld [vmem:[#allocation2 + $0x240] sm:$0xf]
    %v160 = vld [vmem:[#allocation2 + $0x244] sm:$0xff]
    %v161 = vld [vmem:[#allocation2 + $0x24c] sm:$0xff]
    %v162 = vld [vmem:[#allocation2 + $0x254] sm:$0xf]
    %v163 = vld [vmem:[#allocation2 + $0x258] sm:$0xff]
    %v164 = vld [vmem:[#allocation2 + $0x260] sm:$0xff]
    %v165 = vld [vmem:[#allocation2 + $0x268] sm:$0xf]
    %v166 = vld [vmem:[#allocation2 + $0x26c] sm:$0xff]
    %v167 = vld [vmem:[#allocation2 + $0x274] sm:$0xff]
    %v168 = vld [vmem:[#allocation2 + $0x27c] sm:$0xf]
    %v169 = vld [vmem:[#allocation2 + $0x280] sm:$0xff]
    %v170 = vld [vmem:[#allocation2 + $0x288] sm:$0xff]
    %v171 = vld [vmem:[#allocation2 + $0x290] sm:$0xf]
    %v172 = vld [vmem:[#allocation2 + $0x294] sm:$0xff]
    %v173 = vld [vmem:[#allocation2 + $0x29c] sm:$0xff]
    %v174 = vld [vmem:[#allocation2 + $0x2a4] sm:$0xf]
    %v175 = vld [vmem:[#allocation2 + $0x2a8] sm:$0xff]
    %v176 = vld [vmem:[#allocation2 + $0x2b0] sm:$0xff]
    %v177 = vld [vmem:[#allocation2 + $0x2b8] sm:$0xf]
    %v178 = vld [vmem:[#allocation2 + $0x2bc] sm:$0xff]
    %v179 = vld [vmem:[#allocation2 + $0x2c4] sm:$0xff]
    %v180 = vld [vmem:[#allocation2 + $0x2cc] sm:$0xf]
    %v181 = vld [vmem:[#allocation2 + $0x2d0] sm:$0xff]
    %v182 = vld [vmem:[#allocation2 + $0x2d8] sm:$0xff]
    %v183 = vld [vmem:[#allocation2 + $0x2e0] sm:$0xf]
    %v184 = vld [vmem:[#allocation2 + $0x2e4] sm:$0xff]
    %v185 = vld [vmem:[#allocation2 + $0x2ec] sm:$0xff]
    %v186 = vld [vmem:[#allocation2 + $0x2f4] sm:$0xf]
    %v187 = vld [vmem:[#allocation2 + $0x2f8] sm:$0xff]
    %v188 = vld [vmem:[#allocation2 + $0x300] sm:$0xff]
    %v189 = vld [vmem:[#allocation2 + $0x308] sm:$0xf]
    %v190 = vld [vmem:[#allocation2 + $0x30c] sm:$0xff]
    %v191 = vld [vmem:[#allocation2 + $0x314] sm:$0xff]
    %v192 = vld [vmem:[#allocation2 + $0x31c] sm:$0xf]
    %v193 = vld [vmem:[#allocation2 + $0x320] sm:$0xff]
    %v194 = vld [vmem:[#allocation2 + $0x328] sm:$0xff]
    %v195 = vld [vmem:[#allocation2 + $0x330] sm:$0xf]
    %v196 = vld [vmem:[#allocation2 + $0x334] sm:$0xff]
    %v197 = vld [vmem:[#allocation2 + $0x33c] sm:$0xff]
    %v198 = vld [vmem:[#allocation2 + $0x344] sm:$0xf]
    %v199 = vld [vmem:[#allocation2 + $0x348] sm:$0xff]
    %v200 = vld [vmem:[#allocation2 + $0x350] sm:$0xff]
    %v201 = vld [vmem:[#allocation2 + $0x358] sm:$0xf]
    %v202 = vld [vmem:[#allocation2 + $0x35c] sm:$0xff]
    %v203 = vld [vmem:[#allocation2 + $0x364] sm:$0xff]
    %v204 = vld [vmem:[#allocation2 + $0x36c] sm:$0xf]
    %v205 = vld [vmem:[#allocation2 + $0x370] sm:$0xff]
    %v206 = vld [vmem:[#allocation2 + $0x378] sm:$0xff]
    %v207 = vld [vmem:[#allocation2 + $0x380] sm:$0xf]
    %v208 = vld [vmem:[#allocation2 + $0x384] sm:$0xff]
    %v209 = vld [vmem:[#allocation2 + $0x38c] sm:$0xff]
    %v210 = vld [vmem:[#allocation2 + $0x394] sm:$0xf]
    %v211 = vld [vmem:[#allocation2 + $0x398] sm:$0xff]
    %v212 = vld [vmem:[#allocation2 + $0x3a0] sm:$0xff]
    %v213 = vld [vmem:[#allocation2 + $0x3a8] sm:$0xf]
    %v214 = vld [vmem:[#allocation2 + $0x3ac] sm:$0xff]
    %v215 = vld [vmem:[#allocation2 + $0x3b4] sm:$0xff]
    %v216 = vld [vmem:[#allocation2 + $0x3bc] sm:$0xf]
    %v217 = vld [vmem:[#allocation2 + $0x3c0] sm:$0xff]
    %v218 = vld [vmem:[#allocation2 + $0x3c8] sm:$0xff]
    %v219 = vld [vmem:[#allocation2 + $0x3d0] sm:$0xf]
    %v220 = vld [vmem:[#allocation2 + $0x3d4] sm:$0xff]
    %v221 = vld [vmem:[#allocation2 + $0x3dc] sm:$0xff]
    %v222 = vld [vmem:[#allocation2 + $0x3e4] sm:$0xf]
    %v223 = vld [vmem:[#allocation2 + $0x3e8] sm:$0xff]
    %v224 = vld [vmem:[#allocation2 + $0x3f0] sm:$0xff]
    %v225 = vld [vmem:[#allocation2 + $0x3f8] sm:$0xf]
    %v226 = vld [vmem:[#allocation2 + $0x3fc] sm:$0xff]
    %v227 = vld [vmem:[#allocation2 + $0x404] sm:$0xff]
    %v228 = vld [vmem:[#allocation2 + $0x40c] sm:$0xf]
    %v229 = vld [vmem:[#allocation2 + $0x410] sm:$0xff]
    %v230 = vld [vmem:[#allocation2 + $0x418] sm:$0xff]
    %v231 = vld [vmem:[#allocation2 + $0x420] sm:$0xf]
    %v232 = vld [vmem:[#allocation2 + $0x424] sm:$0xff]
    %v233 = vld [vmem:[#allocation2 + $0x42c] sm:$0xff]
    %v234 = vld [vmem:[#allocation2 + $0x434] sm:$0xf]
    %v235 = vld [vmem:[#allocation2 + $0x438] sm:$0xff]
    %v236 = vld [vmem:[#allocation2 + $0x440] sm:$0xff]
    %v237 = vld [vmem:[#allocation2 + $0x448] sm:$0xf]
    %v238 = vld [vmem:[#allocation2 + $0x44c] sm:$0xff]
    %v239 = vld [vmem:[#allocation2 + $0x454] sm:$0xff]
    %v240 = vld [vmem:[#allocation2 + $0x45c] sm:$0xf]
    %v241 = vld [vmem:[#allocation2 + $0x460] sm:$0xff]
    %v242 = vld [vmem:[#allocation2 + $0x468] sm:$0xff]
    %v243 = vld [vmem:[#allocation2 + $0x470] sm:$0xf]
    %v244 = vld [vmem:[#allocation2 + $0x474] sm:$0xff]
    %v245 = vld [vmem:[#allocation2 + $0x47c] sm:$0xff]
    %v246 = vld [vmem:[#allocation2 + $0x484] sm:$0xf]
    %v247 = vld [vmem:[#allocation2 + $0x488] sm:$0xff]
    %v248 = vld [vmem:[#allocation2 + $0x490] sm:$0xff]
    %v249 = vld [vmem:[#allocation2 + $0x498] sm:$0xf]
    %v250 = vld [vmem:[#allocation2 + $0x49c] sm:$0xff]
    %v251 = vld [vmem:[#allocation2 + $0x4a4] sm:$0xff]
    %v252 = vld [vmem:[#allocation2 + $0x4ac] sm:$0xf]
    %v253 = vld [vmem:[#allocation2 + $0x4b0] sm:$0xff]
    %v254 = vld [vmem:[#allocation2 + $0x4b8] sm:$0xff]
    %v255 = vld [vmem:[#allocation2 + $0x4c0] sm:$0xf]
    %v256 = vld [vmem:[#allocation2 + $0x4c4] sm:$0xff]
    %v257 = vld [vmem:[#allocation2 + $0x4cc] sm:$0xff]
    %v258 = vld [vmem:[#allocation2 + $0x4d4] sm:$0xf]
    %v259 = vld [vmem:[#allocation2 + $0x4d8] sm:$0xff]
    %v260 = vld [vmem:[#allocation2 + $0x4e0] sm:$0xff]
    %v261 = vld [vmem:[#allocation2 + $0x4e8] sm:$0xf]
    %v262 = vld [vmem:[#allocation2 + $0x4ec] sm:$0xff]
    %v263 = vld [vmem:[#allocation2 + $0x4f4] sm:$0xff]
    %v264 = vld [vmem:[#allocation2 + $0x4fc] sm:$0xf]
    %v265 = vld [vmem:[#allocation2 + $0x500] sm:$0xff]
    %v266 = vld [vmem:[#allocation2 + $0x508] sm:$0xff]
    %v267 = vld [vmem:[#allocation2 + $0x510] sm:$0xf]
    %v268 = vld [vmem:[#allocation2 + $0x514] sm:$0xff]
    %v269 = vld [vmem:[#allocation2 + $0x51c] sm:$0xff]
    %v270 = vld [vmem:[#allocation2 + $0x524] sm:$0xf]
    %v271 = vld [vmem:[#allocation2 + $0x528] sm:$0xff]
    %v272 = vld [vmem:[#allocation2 + $0x530] sm:$0xff]
    %v273 = vld [vmem:[#allocation2 + $0x538] sm:$0xf]
    %v274 = vld [vmem:[#allocation2 + $0x53c] sm:$0xff]
    %v275 = vld [vmem:[#allocation2 + $0x544] sm:$0xff]
    %v276 = vld [vmem:[#allocation2 + $0x54c] sm:$0xf]
    %v277 = vld [vmem:[#allocation2 + $0x550] sm:$0xff]
    %v278 = vld [vmem:[#allocation2 + $0x558] sm:$0xff]
    %v279 = vld [vmem:[#allocation2 + $0x560] sm:$0xf]
    %v280 = vld [vmem:[#allocation2 + $0x564] sm:$0xff]
    %v281 = vld [vmem:[#allocation2 + $0x56c] sm:$0xff]
    %v282 = vld [vmem:[#allocation2 + $0x574] sm:$0xf]
    %v283 = vld [vmem:[#allocation2 + $0x578] sm:$0xff]
    %v284 = vld [vmem:[#allocation2 + $0x580] sm:$0xff]
    %v285 = vld [vmem:[#allocation2 + $0x588] sm:$0xf]
    %v286 = vld [vmem:[#allocation2 + $0x58c] sm:$0xff]
    %v287 = vld [vmem:[#allocation2 + $0x594] sm:$0xff]
    %v288 = vld [vmem:[#allocation2 + $0x59c] sm:$0xf]
    %v289 = vld [vmem:[#allocation2 + $0x5a0] sm:$0xff]
    %v290 = vld [vmem:[#allocation2 + $0x5a8] sm:$0xff]
    %v291 = vld [vmem:[#allocation2 + $0x5b0] sm:$0xf]
    %v292 = vld [vmem:[#allocation2 + $0x5b4] sm:$0xff]
    %v293 = vld [vmem:[#allocation2 + $0x5bc] sm:$0xff]
    %v294 = vld [vmem:[#allocation2 + $0x5c4] sm:$0xf]
    %v295 = vld [vmem:[#allocation2 + $0x5c8] sm:$0xff]
    %v296 = vld [vmem:[#allocation2 + $0x5d0] sm:$0xff]
    %v297 = vld [vmem:[#allocation2 + $0x5d8] sm:$0xf]
    %v298 = vld [vmem:[#allocation2 + $0x5dc] sm:$0xff]
    %v299 = vld [vmem:[#allocation2 + $0x5e4] sm:$0xff]
    %v300 = vld [vmem:[#allocation2 + $0x5ec] sm:$0xf]
    %v301 = vld [vmem:[#allocation2 + $0x5f0] sm:$0xff]
    %v302 = vld [vmem:[#allocation2 + $0x5f8] sm:$0xff]
    %v303 = vld [vmem:[#allocation2 + $0x600] sm:$0xf]
    %v304 = vld [vmem:[#allocation2 + $0x604] sm:$0xff]
    %v305 = vld [vmem:[#allocation2 + $0x60c] sm:$0xff]
    %v306 = vld [vmem:[#allocation2 + $0x614] sm:$0xf]
    %v307 = vld [vmem:[#allocation2 + $0x618] sm:$0xff]
    %v308 = vld [vmem:[#allocation2 + $0x620] sm:$0xff]
    %v309 = vld [vmem:[#allocation2 + $0x628] sm:$0xf]
    %v310 = vld [vmem:[#allocation2 + $0x62c] sm:$0xff]
    %v311 = vld [vmem:[#allocation2 + $0x634] sm:$0xff]
    %v312 = vld [vmem:[#allocation2 + $0x63c] sm:$0xf]
    %v313 = vld [vmem:[#allocation2 + $0x640] sm:$0xff]
    %v314 = vld [vmem:[#allocation2 + $0x648] sm:$0xff]
    %v315 = vld [vmem:[#allocation2 + $0x650] sm:$0xf]
    %v316 = vld [vmem:[#allocation2 + $0x654] sm:$0xff]
    %v317 = vld [vmem:[#allocation2 + $0x65c] sm:$0xff]
    %v318 = vld [vmem:[#allocation2 + $0x664] sm:$0xf]
    %v319 = vld [vmem:[#allocation2 + $0x668] sm:$0xff]
    %v320 = vld [vmem:[#allocation2 + $0x670] sm:$0xff]
    %v321 = vld [vmem:[#allocation2 + $0x678] sm:$0xf]
    %v322 = vld [vmem:[#allocation2 + $0x67c] sm:$0xff]
    %v323 = vld [vmem:[#allocation2 + $0x684] sm:$0xff]
    %v324 = vld [vmem:[#allocation2 + $0x68c] sm:$0xf]
    %v325 = vld [vmem:[#allocation2 + $0x690] sm:$0xff]
    %v326 = vld [vmem:[#allocation2 + $0x698] sm:$0xff]
    %v327 = vld [vmem:[#allocation2 + $0x6a0] sm:$0xf]
    %v328 = vld [vmem:[#allocation2 + $0x6a4] sm:$0xff]
    %v329 = vld [vmem:[#allocation2 + $0x6ac] sm:$0xff]
    %v330 = vld [vmem:[#allocation2 + $0x6b4] sm:$0xf]
    %v331 = vld [vmem:[#allocation2 + $0x6b8] sm:$0xff]
    %v332 = vld [vmem:[#allocation2 + $0x6c0] sm:$0xff]
    %v333 = vld [vmem:[#allocation2 + $0x6c8] sm:$0xf]
    %v334 = vld [vmem:[#allocation2 + $0x6cc] sm:$0xff]
    %v335 = vld [vmem:[#allocation2 + $0x6d4] sm:$0xff]
    %v336 = vld [vmem:[#allocation2 + $0x6dc] sm:$0xf]
    %v337 = vld [vmem:[#allocation2 + $0x6e0] sm:$0xff]
    %v338 = vld [vmem:[#allocation2 + $0x6e8] sm:$0xff]
    %v339 = vld [vmem:[#allocation2 + $0x6f0] sm:$0xf]
    %v340 = vld [vmem:[#allocation2 + $0x6f4] sm:$0xff]
    %v341 = vld [vmem:[#allocation2 + $0x6fc] sm:$0xff]
    %v342 = vld [vmem:[#allocation2 + $0x704] sm:$0xf]
    %v343 = vld [vmem:[#allocation2 + $0x708] sm:$0xff]
    %v344 = vld [vmem:[#allocation2 + $0x710] sm:$0xff]
    %v345 = vld [vmem:[#allocation2 + $0x718] sm:$0xf]
    %v346 = vld [vmem:[#allocation2 + $0x71c] sm:$0xff]
    %v347 = vld [vmem:[#allocation2 + $0x724] sm:$0xff]
    %v348 = vld [vmem:[#allocation2 + $0x72c] sm:$0xf]
    %v349 = vld [vmem:[#allocation2 + $0x730] sm:$0xff]
    %v350 = vld [vmem:[#allocation2 + $0x738] sm:$0xff]
    %v351 = vld [vmem:[#allocation2 + $0x740] sm:$0xf]
    %v352 = vld [vmem:[#allocation2 + $0x744] sm:$0xff]
    %v353 = vld [vmem:[#allocation2 + $0x74c] sm:$0xff]
    %v354 = vld [vmem:[#allocation2 + $0x754] sm:$0xf]
    %v355 = vld [vmem:[#allocation2 + $0x758] sm:$0xff]
    %v356 = vld [vmem:[#allocation2 + $0x760] sm:$0xff]
    %v357 = vld [vmem:[#allocation2 + $0x768] sm:$0xf]
    %v358 = vld [vmem:[#allocation2 + $0x76c] sm:$0xff]
    %v359 = vld [vmem:[#allocation2 + $0x774] sm:$0xff]
    %v360 = vld [vmem:[#allocation2 + $0x77c] sm:$0xf]
    %v361 = vld [vmem:[#allocation2 + $0x780] sm:$0xff]
    %v362 = vld [vmem:[#allocation2 + $0x788] sm:$0xff]
    %v363 = vld [vmem:[#allocation2 + $0x790] sm:$0xf]
    %v364 = vld [vmem:[#allocation2 + $0x794] sm:$0xff]
    %v365 = vld [vmem:[#allocation2 + $0x79c] sm:$0xff]
    %v366 = vld [vmem:[#allocation2 + $0x7a4] sm:$0xf]
    %v367 = vld [vmem:[%s2] sm:$0x1f]
    %v369 = vperm.slane %v367, 0
    %v370 = vperm.slane %v367, 1
    %v371 = vperm.slane %v367, 2
    %v372 = vperm.slane %v367, 3
    %v373 = vperm.slane %v367, 4
    %v673 = vunpack.c.l.b16 %v73
    %v674 = vunpack.c.h.b16 %v73
    %v675 = vunpack.c.l.b16 %v74
    %v676 = vunpack.c.h.b16 %v74
    %v677 = vunpack.c.l.b16 %v75
    %v678 = vunpack.c.l.b16 %v76
    %v679 = vunpack.c.h.b16 %v76
    %v680 = vunpack.c.l.b16 %v77
    %v681 = vunpack.c.h.b16 %v77
    %v682 = vunpack.c.l.b16 %v78
    %v683 = vunpack.c.l.b16 %v79
    %v684 = vunpack.c.h.b16 %v79
    %v685 = vunpack.c.l.b16 %v80
    %v686 = vunpack.c.h.b16 %v80
    %v687 = vunpack.c.l.b16 %v81
    %v688 = vunpack.c.l.b16 %v82
    %v689 = vunpack.c.h.b16 %v82
    %v690 = vunpack.c.l.b16 %v83
    %v691 = vunpack.c.h.b16 %v83
    %v692 = vunpack.c.l.b16 %v84
    %v693 = vunpack.c.l.b16 %v85
    %v694 = vunpack.c.h.b16 %v85
    %v695 = vunpack.c.l.b16 %v86
    %v696 = vunpack.c.h.b16 %v86
    %v697 = vunpack.c.l.b16 %v87
    %v698 = vunpack.c.l.b16 %v88
    %v699 = vunpack.c.h.b16 %v88
    %v700 = vunpack.c.l.b16 %v89
    %v701 = vunpack.c.h.b16 %v89
    %v702 = vunpack.c.l.b16 %v90
    %v703 = vunpack.c.l.b16 %v91
    %v704 = vunpack.c.h.b16 %v91
    %v705 = vunpack.c.l.b16 %v92
    %v706 = vunpack.c.h.b16 %v92
    %v707 = vunpack.c.l.b16 %v93
    %v708 = vunpack.c.l.b16 %v94
    %v709 = vunpack.c.h.b16 %v94
    %v710 = vunpack.c.l.b16 %v95
    %v711 = vunpack.c.h.b16 %v95
    %v712 = vunpack.c.l.b16 %v96
    %v713 = vunpack.c.l.b16 %v97
    %v714 = vunpack.c.h.b16 %v97
    %v715 = vunpack.c.l.b16 %v98
    %v716 = vunpack.c.h.b16 %v98
    %v717 = vunpack.c.l.b16 %v99
    %v718 = vunpack.c.l.b16 %v100
    %v719 = vunpack.c.h.b16 %v100
    %v720 = vunpack.c.l.b16 %v101
    %v721 = vunpack.c.h.b16 %v101
    %v722 = vunpack.c.l.b16 %v102
    %v723 = vunpack.c.l.b16 %v103
    %v724 = vunpack.c.h.b16 %v103
    %v725 = vunpack.c.l.b16 %v104
    %v726 = vunpack.c.h.b16 %v104
    %v727 = vunpack.c.l.b16 %v105
    %v728 = vunpack.c.l.b16 %v106
    %v729 = vunpack.c.h.b16 %v106
    %v730 = vunpack.c.l.b16 %v107
    %v731 = vunpack.c.h.b16 %v107
    %v732 = vunpack.c.l.b16 %v108
    %v733 = vunpack.c.l.b16 %v109
    %v734 = vunpack.c.h.b16 %v109
    %v735 = vunpack.c.l.b16 %v110
    %v736 = vunpack.c.h.b16 %v110
    %v737 = vunpack.c.l.b16 %v111
    %v738 = vunpack.c.l.b16 %v112
    %v739 = vunpack.c.h.b16 %v112
    %v740 = vunpack.c.l.b16 %v113
    %v741 = vunpack.c.h.b16 %v113
    %v742 = vunpack.c.l.b16 %v114
    %v743 = vunpack.c.l.b16 %v115
    %v744 = vunpack.c.h.b16 %v115
    %v745 = vunpack.c.l.b16 %v116
    %v746 = vunpack.c.h.b16 %v116
    %v747 = vunpack.c.l.b16 %v117
    %v748 = vunpack.c.l.b16 %v118
    %v749 = vunpack.c.h.b16 %v118
    %v750 = vunpack.c.l.b16 %v119
    %v751 = vunpack.c.h.b16 %v119
    %v752 = vunpack.c.l.b16 %v120
    %v753 = vunpack.c.l.b16 %v121
    %v754 = vunpack.c.h.b16 %v121
    %v755 = vunpack.c.l.b16 %v122
    %v756 = vunpack.c.h.b16 %v122
    %v757 = vunpack.c.l.b16 %v123
    %v758 = vunpack.c.l.b16 %v124
    %v759 = vunpack.c.h.b16 %v124
    %v760 = vunpack.c.l.b16 %v125
    %v761 = vunpack.c.h.b16 %v125
    %v762 = vunpack.c.l.b16 %v126
    %v763 = vunpack.c.l.b16 %v127
    %v764 = vunpack.c.h.b16 %v127
    %v765 = vunpack.c.l.b16 %v128
    %v766 = vunpack.c.h.b16 %v128
    %v767 = vunpack.c.l.b16 %v129
    %v768 = vunpack.c.l.b16 %v130
    %v769 = vunpack.c.h.b16 %v130
    %v770 = vunpack.c.l.b16 %v131
    %v771 = vunpack.c.h.b16 %v131
    %v772 = vunpack.c.l.b16 %v132
    %v773 = vunpack.c.l.b16 %v133
    %v774 = vunpack.c.h.b16 %v133
    %v775 = vunpack.c.l.b16 %v134
    %v776 = vunpack.c.h.b16 %v134
    %v777 = vunpack.c.l.b16 %v135
    %v778 = vunpack.c.l.b16 %v136
    %v779 = vunpack.c.h.b16 %v136
    %v780 = vunpack.c.l.b16 %v137
    %v781 = vunpack.c.h.b16 %v137
    %v782 = vunpack.c.l.b16 %v138
    %v783 = vunpack.c.l.b16 %v139
    %v784 = vunpack.c.h.b16 %v139
    %v785 = vunpack.c.l.b16 %v140
    %v786 = vunpack.c.h.b16 %v140
    %v787 = vunpack.c.l.b16 %v141
    %v788 = vunpack.c.l.b16 %v142
    %v789 = vunpack.c.h.b16 %v142
    %v790 = vunpack.c.l.b16 %v143
    %v791 = vunpack.c.h.b16 %v143
    %v792 = vunpack.c.l.b16 %v144
    %v793 = vunpack.c.l.b16 %v145
    %v794 = vunpack.c.h.b16 %v145
    %v795 = vunpack.c.l.b16 %v146
    %v796 = vunpack.c.h.b16 %v146
    %v797 = vunpack.c.l.b16 %v147
    %v798 = vunpack.c.l.b16 %v148
    %v799 = vunpack.c.h.b16 %v148
    %v800 = vunpack.c.l.b16 %v149
    %v801 = vunpack.c.h.b16 %v149
    %v802 = vunpack.c.l.b16 %v150
    %v803 = vunpack.c.l.b16 %v151
    %v804 = vunpack.c.h.b16 %v151
    %v805 = vunpack.c.l.b16 %v152
    %v806 = vunpack.c.h.b16 %v152
    %v807 = vunpack.c.l.b16 %v153
    %v808 = vunpack.c.l.b16 %v154
    %v809 = vunpack.c.h.b16 %v154
    %v810 = vunpack.c.l.b16 %v155
    %v811 = vunpack.c.h.b16 %v155
    %v812 = vunpack.c.l.b16 %v156
    %v813 = vunpack.c.l.b16 %v157
    %v814 = vunpack.c.h.b16 %v157
    %v815 = vunpack.c.l.b16 %v158
    %v816 = vunpack.c.h.b16 %v158
    %v817 = vunpack.c.l.b16 %v159
    %v818 = vunpack.c.l.b16 %v160
    %v819 = vunpack.c.h.b16 %v160
    %v820 = vunpack.c.l.b16 %v161
    %v821 = vunpack.c.h.b16 %v161
    %v822 = vunpack.c.l.b16 %v162
    %v823 = vunpack.c.l.b16 %v163
    %v824 = vunpack.c.h.b16 %v163
    %v825 = vunpack.c.l.b16 %v164
    %v826 = vunpack.c.h.b16 %v164
    %v827 = vunpack.c.l.b16 %v165
    %v828 = vunpack.c.l.b16 %v166
    %v829 = vunpack.c.h.b16 %v166
    %v830 = vunpack.c.l.b16 %v167
    %v831 = vunpack.c.h.b16 %v167
    %v832 = vunpack.c.l.b16 %v168
    %v833 = vunpack.c.l.b16 %v169
    %v834 = vunpack.c.h.b16 %v169
    %v835 = vunpack.c.l.b16 %v170
    %v836 = vunpack.c.h.b16 %v170
    %v837 = vunpack.c.l.b16 %v171
    %v838 = vunpack.c.l.b16 %v172
    %v839 = vunpack.c.h.b16 %v172
    %v840 = vunpack.c.l.b16 %v173
    %v841 = vunpack.c.h.b16 %v173
    %v842 = vunpack.c.l.b16 %v174
    %v843 = vunpack.c.l.b16 %v175
    %v844 = vunpack.c.h.b16 %v175
    %v845 = vunpack.c.l.b16 %v176
    %v846 = vunpack.c.h.b16 %v176
    %v847 = vunpack.c.l.b16 %v177
    %v848 = vunpack.c.l.b16 %v178
    %v849 = vunpack.c.h.b16 %v178
    %v850 = vunpack.c.l.b16 %v179
    %v851 = vunpack.c.h.b16 %v179
    %v852 = vunpack.c.l.b16 %v180
    %v853 = vunpack.c.l.b16 %v181
    %v854 = vunpack.c.h.b16 %v181
    %v855 = vunpack.c.l.b16 %v182
    %v856 = vunpack.c.h.b16 %v182
    %v857 = vunpack.c.l.b16 %v183
    %v858 = vunpack.c.l.b16 %v184
    %v859 = vunpack.c.h.b16 %v184
    %v860 = vunpack.c.l.b16 %v185
    %v861 = vunpack.c.h.b16 %v185
    %v862 = vunpack.c.l.b16 %v186
    %v863 = vunpack.c.l.b16 %v187
    %v864 = vunpack.c.h.b16 %v187
    %v865 = vunpack.c.l.b16 %v188
    %v866 = vunpack.c.h.b16 %v188
    %v867 = vunpack.c.l.b16 %v189
    %v868 = vunpack.c.l.b16 %v190
    %v869 = vunpack.c.h.b16 %v190
    %v870 = vunpack.c.l.b16 %v191
    %v871 = vunpack.c.h.b16 %v191
    %v872 = vunpack.c.l.b16 %v192
    %v873 = vunpack.c.l.b16 %v193
    %v874 = vunpack.c.h.b16 %v193
    %v875 = vunpack.c.l.b16 %v194
    %v876 = vunpack.c.h.b16 %v194
    %v877 = vunpack.c.l.b16 %v195
    %v878 = vunpack.c.l.b16 %v196
    %v879 = vunpack.c.h.b16 %v196
    %v880 = vunpack.c.l.b16 %v197
    %v881 = vunpack.c.h.b16 %v197
    %v882 = vunpack.c.l.b16 %v198
    %v883 = vunpack.c.l.b16 %v199
    %v884 = vunpack.c.h.b16 %v199
    %v885 = vunpack.c.l.b16 %v200
    %v886 = vunpack.c.h.b16 %v200
    %v887 = vunpack.c.l.b16 %v201
    %v888 = vunpack.c.l.b16 %v202
    %v889 = vunpack.c.h.b16 %v202
    %v890 = vunpack.c.l.b16 %v203
    %v891 = vunpack.c.h.b16 %v203
    %v892 = vunpack.c.l.b16 %v204
    %v893 = vunpack.c.l.b16 %v205
    %v894 = vunpack.c.h.b16 %v205
    %v895 = vunpack.c.l.b16 %v206
    %v896 = vunpack.c.h.b16 %v206
    %v897 = vunpack.c.l.b16 %v207
    %v898 = vunpack.c.l.b16 %v208
    %v899 = vunpack.c.h.b16 %v208
    %v900 = vunpack.c.l.b16 %v209
    %v901 = vunpack.c.h.b16 %v209
    %v902 = vunpack.c.l.b16 %v210
    %v903 = vunpack.c.l.b16 %v211
    %v904 = vunpack.c.h.b16 %v211
    %v905 = vunpack.c.l.b16 %v212
    %v906 = vunpack.c.h.b16 %v212
    %v907 = vunpack.c.l.b16 %v213
    %v908 = vunpack.c.l.b16 %v214
    %v909 = vunpack.c.h.b16 %v214
    %v910 = vunpack.c.l.b16 %v215
    %v911 = vunpack.c.h.b16 %v215
    %v912 = vunpack.c.l.b16 %v216
    %v913 = vunpack.c.l.b16 %v217
    %v914 = vunpack.c.h.b16 %v217
    %v915 = vunpack.c.l.b16 %v218
    %v916 = vunpack.c.h.b16 %v218
    %v917 = vunpack.c.l.b16 %v219
    %v918 = vunpack.c.l.b16 %v220
    %v919 = vunpack.c.h.b16 %v220
    %v920 = vunpack.c.l.b16 %v221
    %v921 = vunpack.c.h.b16 %v221
    %v922 = vunpack.c.l.b16 %v222
    %v923 = vunpack.c.l.b16 %v223
    %v924 = vunpack.c.h.b16 %v223
    %v925 = vunpack.c.l.b16 %v224
    %v926 = vunpack.c.h.b16 %v224
    %v927 = vunpack.c.l.b16 %v225
    %v928 = vunpack.c.l.b16 %v226
    %v929 = vunpack.c.h.b16 %v226
    %v930 = vunpack.c.l.b16 %v227
    %v931 = vunpack.c.h.b16 %v227
    %v932 = vunpack.c.l.b16 %v228
    %v933 = vunpack.c.l.b16 %v229
    %v934 = vunpack.c.h.b16 %v229
    %v935 = vunpack.c.l.b16 %v230
    %v936 = vunpack.c.h.b16 %v230
    %v937 = vunpack.c.l.b16 %v231
    %v938 = vunpack.c.l.b16 %v232
    %v939 = vunpack.c.h.b16 %v232
    %v940 = vunpack.c.l.b16 %v233
    %v941 = vunpack.c.h.b16 %v233
    %v942 = vunpack.c.l.b16 %v234
    %v943 = vunpack.c.l.b16 %v235
    %v944 = vunpack.c.h.b16 %v235
    %v945 = vunpack.c.l.b16 %v236
    %v946 = vunpack.c.h.b16 %v236
    %v947 = vunpack.c.l.b16 %v237
    %v948 = vunpack.c.l.b16 %v238
    %v949 = vunpack.c.h.b16 %v238
    %v950 = vunpack.c.l.b16 %v239
    %v951 = vunpack.c.h.b16 %v239
    %v952 = vunpack.c.l.b16 %v240
    %v953 = vunpack.c.l.b16 %v241
    %v954 = vunpack.c.h.b16 %v241
    %v955 = vunpack.c.l.b16 %v242
    %v956 = vunpack.c.h.b16 %v242
    %v957 = vunpack.c.l.b16 %v243
    %v958 = vunpack.c.l.b16 %v244
    %v959 = vunpack.c.h.b16 %v244
    %v960 = vunpack.c.l.b16 %v245
    %v961 = vunpack.c.h.b16 %v245
    %v962 = vunpack.c.l.b16 %v246
    %v963 = vunpack.c.l.b16 %v247
    %v964 = vunpack.c.h.b16 %v247
    %v965 = vunpack.c.l.b16 %v248
    %v966 = vunpack.c.h.b16 %v248
    %v967 = vunpack.c.l.b16 %v249
    %v968 = vunpack.c.l.b16 %v250
    %v969 = vunpack.c.h.b16 %v250
    %v970 = vunpack.c.l.b16 %v251
    %v971 = vunpack.c.h.b16 %v251
    %v972 = vunpack.c.l.b16 %v252
    %v973 = vunpack.c.l.b16 %v253
    %v974 = vunpack.c.h.b16 %v253
    %v975 = vunpack.c.l.b16 %v254
    %v976 = vunpack.c.h.b16 %v254
    %v977 = vunpack.c.l.b16 %v255
    %v978 = vunpack.c.l.b16 %v256
    %v979 = vunpack.c.h.b16 %v256
    %v980 = vunpack.c.l.b16 %v257
    %v981 = vunpack.c.h.b16 %v257
    %v982 = vunpack.c.l.b16 %v258
    %v983 = vunpack.c.l.b16 %v259
    %v984 = vunpack.c.h.b16 %v259
    %v985 = vunpack.c.l.b16 %v260
    %v986 = vunpack.c.h.b16 %v260
    %v987 = vunpack.c.l.b16 %v261
    %v988 = vunpack.c.l.b16 %v262
    %v989 = vunpack.c.h.b16 %v262
    %v990 = vunpack.c.l.b16 %v263
    %v991 = vunpack.c.h.b16 %v263
    %v992 = vunpack.c.l.b16 %v264
    %v993 = vunpack.c.l.b16 %v265
    %v994 = vunpack.c.h.b16 %v265
    %v995 = vunpack.c.l.b16 %v266
    %v996 = vunpack.c.h.b16 %v266
    %v997 = vunpack.c.l.b16 %v267
    %v998 = vunpack.c.l.b16 %v268
    %v999 = vunpack.c.h.b16 %v268
    %v1000 = vunpack.c.l.b16 %v269
    %v1001 = vunpack.c.h.b16 %v269
    %v1002 = vunpack.c.l.b16 %v270
    %v1003 = vunpack.c.l.b16 %v271
    %v1004 = vunpack.c.h.b16 %v271
    %v1005 = vunpack.c.l.b16 %v272
    %v1006 = vunpack.c.h.b16 %v272
    %v1007 = vunpack.c.l.b16 %v273
    %v1008 = vunpack.c.l.b16 %v274
    %v1009 = vunpack.c.h.b16 %v274
    %v1010 = vunpack.c.l.b16 %v275
    %v1011 = vunpack.c.h.b16 %v275
    %v1012 = vunpack.c.l.b16 %v276
    %v1013 = vunpack.c.l.b16 %v277
    %v1014 = vunpack.c.h.b16 %v277
    %v1015 = vunpack.c.l.b16 %v278
    %v1016 = vunpack.c.h.b16 %v278
    %v1017 = vunpack.c.l.b16 %v279
    %v1018 = vunpack.c.l.b16 %v280
    %v1019 = vunpack.c.h.b16 %v280
    %v1020 = vunpack.c.l.b16 %v281
    %v1021 = vunpack.c.h.b16 %v281
    %v1022 = vunpack.c.l.b16 %v282
    %v1023 = vunpack.c.l.b16 %v283
    %v1024 = vunpack.c.h.b16 %v283
    %v1025 = vunpack.c.l.b16 %v284
    %v1026 = vunpack.c.h.b16 %v284
    %v1027 = vunpack.c.l.b16 %v285
    %v1028 = vunpack.c.l.b16 %v286
    %v1029 = vunpack.c.h.b16 %v286
    %v1030 = vunpack.c.l.b16 %v287
    %v1031 = vunpack.c.h.b16 %v287
    %v1032 = vunpack.c.l.b16 %v288
    %v1033 = vunpack.c.l.b16 %v289
    %v1034 = vunpack.c.h.b16 %v289
    %v1035 = vunpack.c.l.b16 %v290
    %v1036 = vunpack.c.h.b16 %v290
    %v1037 = vunpack.c.l.b16 %v291
    %v1038 = vunpack.c.l.b16 %v292
    %v1039 = vunpack.c.h.b16 %v292
    %v1040 = vunpack.c.l.b16 %v293
    %v1041 = vunpack.c.h.b16 %v293
    %v1042 = vunpack.c.l.b16 %v294
    %v1043 = vunpack.c.l.b16 %v295
    %v1044 = vunpack.c.h.b16 %v295
    %v1045 = vunpack.c.l.b16 %v296
    %v1046 = vunpack.c.h.b16 %v296
    %v1047 = vunpack.c.l.b16 %v297
    %v1048 = vunpack.c.l.b16 %v298
    %v1049 = vunpack.c.h.b16 %v298
    %v1050 = vunpack.c.l.b16 %v299
    %v1051 = vunpack.c.h.b16 %v299
    %v1052 = vunpack.c.l.b16 %v300
    %v1053 = vunpack.c.l.b16 %v301
    %v1054 = vunpack.c.h.b16 %v301
    %v1055 = vunpack.c.l.b16 %v302
    %v1056 = vunpack.c.h.b16 %v302
    %v1057 = vunpack.c.l.b16 %v303
    %v1058 = vunpack.c.l.b16 %v304
    %v1059 = vunpack.c.h.b16 %v304
    %v1060 = vunpack.c.l.b16 %v305
    %v1061 = vunpack.c.h.b16 %v305
    %v1062 = vunpack.c.l.b16 %v306
    %v1063 = vunpack.c.l.b16 %v307
    %v1064 = vunpack.c.h.b16 %v307
    %v1065 = vunpack.c.l.b16 %v308
    %v1066 = vunpack.c.h.b16 %v308
    %v1067 = vunpack.c.l.b16 %v309
    %v1068 = vunpack.c.l.b16 %v310
    %v1069 = vunpack.c.h.b16 %v310
    %v1070 = vunpack.c.l.b16 %v311
    %v1071 = vunpack.c.h.b16 %v311
    %v1072 = vunpack.c.l.b16 %v312
    %v1073 = vunpack.c.l.b16 %v313
    %v1074 = vunpack.c.h.b16 %v313
    %v1075 = vunpack.c.l.b16 %v314
    %v1076 = vunpack.c.h.b16 %v314
    %v1077 = vunpack.c.l.b16 %v315
    %v1078 = vunpack.c.l.b16 %v316
    %v1079 = vunpack.c.h.b16 %v316
    %v1080 = vunpack.c.l.b16 %v317
    %v1081 = vunpack.c.h.b16 %v317
    %v1082 = vunpack.c.l.b16 %v318
    %v1083 = vunpack.c.l.b16 %v319
    %v1084 = vunpack.c.h.b16 %v319
    %v1085 = vunpack.c.l.b16 %v320
    %v1086 = vunpack.c.h.b16 %v320
    %v1087 = vunpack.c.l.b16 %v321
    %v1088 = vunpack.c.l.b16 %v322
    %v1089 = vunpack.c.h.b16 %v322
    %v1090 = vunpack.c.l.b16 %v323
    %v1091 = vunpack.c.h.b16 %v323
    %v1092 = vunpack.c.l.b16 %v324
    %v1093 = vunpack.c.l.b16 %v325
    %v1094 = vunpack.c.h.b16 %v325
    %v1095 = vunpack.c.l.b16 %v326
    %v1096 = vunpack.c.h.b16 %v326
    %v1097 = vunpack.c.l.b16 %v327
    %v1098 = vunpack.c.l.b16 %v328
    %v1099 = vunpack.c.h.b16 %v328
    %v1100 = vunpack.c.l.b16 %v329
    %v1101 = vunpack.c.h.b16 %v329
    %v1102 = vunpack.c.l.b16 %v330
    %v1103 = vunpack.c.l.b16 %v331
    %v1104 = vunpack.c.h.b16 %v331
    %v1105 = vunpack.c.l.b16 %v332
    %v1106 = vunpack.c.h.b16 %v332
    %v1107 = vunpack.c.l.b16 %v333
    %v1108 = vunpack.c.l.b16 %v334
    %v1109 = vunpack.c.h.b16 %v334
    %v1110 = vunpack.c.l.b16 %v335
    %v1111 = vunpack.c.h.b16 %v335
    %v1112 = vunpack.c.l.b16 %v336
    %v1113 = vunpack.c.l.b16 %v337
    %v1114 = vunpack.c.h.b16 %v337
    %v1115 = vunpack.c.l.b16 %v338
    %v1116 = vunpack.c.h.b16 %v338
    %v1117 = vunpack.c.l.b16 %v339
    %v1118 = vunpack.c.l.b16 %v340
    %v1119 = vunpack.c.h.b16 %v340
    %v1120 = vunpack.c.l.b16 %v341
    %v1121 = vunpack.c.h.b16 %v341
    %v1122 = vunpack.c.l.b16 %v342
    %v1123 = vunpack.c.l.b16 %v343
    %v1124 = vunpack.c.h.b16 %v343
    %v1125 = vunpack.c.l.b16 %v344
    %v1126 = vunpack.c.h.b16 %v344
    %v1127 = vunpack.c.l.b16 %v345
    %v1128 = vunpack.c.l.b16 %v346
    %v1129 = vunpack.c.h.b16 %v346
    %v1130 = vunpack.c.l.b16 %v347
    %v1131 = vunpack.c.h.b16 %v347
    %v1132 = vunpack.c.l.b16 %v348
    %v1133 = vunpack.c.l.b16 %v349
    %v1134 = vunpack.c.h.b16 %v349
    %v1135 = vunpack.c.l.b16 %v350
    %v1136 = vunpack.c.h.b16 %v350
    %v1137 = vunpack.c.l.b16 %v351
    %v1138 = vunpack.c.l.b16 %v352
    %v1139 = vunpack.c.h.b16 %v352
    %v1140 = vunpack.c.l.b16 %v353
    %v1141 = vunpack.c.h.b16 %v353
    %v1142 = vunpack.c.l.b16 %v354
    %v1143 = vunpack.c.l.b16 %v355
    %v1144 = vunpack.c.h.b16 %v355
    %v1145 = vunpack.c.l.b16 %v356
    %v1146 = vunpack.c.h.b16 %v356
    %v1147 = vunpack.c.l.b16 %v357
    %v1148 = vunpack.c.l.b16 %v358
    %v1149 = vunpack.c.h.b16 %v358
    %v1150 = vunpack.c.l.b16 %v359
    %v1151 = vunpack.c.h.b16 %v359
    %v1152 = vunpack.c.l.b16 %v360
    %v1153 = vunpack.c.l.b16 %v361
    %v1154 = vunpack.c.h.b16 %v361
    %v1155 = vunpack.c.l.b16 %v362
    %v1156 = vunpack.c.h.b16 %v362
    %v1157 = vunpack.c.l.b16 %v363
    %v1158 = vunpack.c.l.b16 %v364
    %v1159 = vunpack.c.h.b16 %v364
    %v1160 = vunpack.c.l.b16 %v365
    %v1161 = vunpack.c.h.b16 %v365
    %v1162 = vunpack.c.l.b16 %v366
    %v1163 = vpack.c.b16 %v678, %v673
    %v1164 = vpack.c.b16 %v679, %v674
    %v1165 = vpack.c.b16 %v680, %v675
    %v1166 = vpack.c.b16 %v681, %v676
    %v1167 = vpack.c.b16 %v682, %v677
    %v1168 = vpack.c.b16 %v688, %v683
    %v1169 = vpack.c.b16 %v689, %v684
    %v1170 = vpack.c.b16 %v690, %v685
    %v1171 = vpack.c.b16 %v691, %v686
    %v1172 = vpack.c.b16 %v692, %v687
    %v1173 = vpack.c.b16 %v698, %v693
    %v1174 = vpack.c.b16 %v699, %v694
    %v1175 = vpack.c.b16 %v700, %v695
    %v1176 = vpack.c.b16 %v701, %v696
    %v1177 = vpack.c.b16 %v702, %v697
    %v1178 = vpack.c.b16 %v708, %v703
    %v1179 = vpack.c.b16 %v709, %v704
    %v1180 = vpack.c.b16 %v710, %v705
    %v1181 = vpack.c.b16 %v711, %v706
    %v1182 = vpack.c.b16 %v712, %v707
    %v1183 = vpack.c.b16 %v718, %v713
    %v1184 = vpack.c.b16 %v719, %v714
    %v1185 = vpack.c.b16 %v720, %v715
    %v1186 = vpack.c.b16 %v721, %v716
    %v1187 = vpack.c.b16 %v722, %v717
    %v1188 = vpack.c.b16 %v728, %v723
    %v1189 = vpack.c.b16 %v729, %v724
    %v1190 = vpack.c.b16 %v730, %v725
    %v1191 = vpack.c.b16 %v731, %v726
    %v1192 = vpack.c.b16 %v732, %v727
    %v1193 = vpack.c.b16 %v738, %v733
    %v1194 = vpack.c.b16 %v739, %v734
    %v1195 = vpack.c.b16 %v740, %v735
    %v1196 = vpack.c.b16 %v741, %v736
    %v1197 = vpack.c.b16 %v742, %v737
    %v1198 = vpack.c.b16 %v748, %v743
    %v1199 = vpack.c.b16 %v749, %v744
    %v1200 = vpack.c.b16 %v750, %v745
    %v1201 = vpack.c.b16 %v751, %v746
    %v1202 = vpack.c.b16 %v752, %v747
    %v1203 = vpack.c.b16 %v758, %v753
    %v1204 = vpack.c.b16 %v759, %v754
    %v1205 = vpack.c.b16 %v760, %v755
    %v1206 = vpack.c.b16 %v761, %v756
    %v1207 = vpack.c.b16 %v762, %v757
    %v1208 = vpack.c.b16 %v768, %v763
    %v1209 = vpack.c.b16 %v769, %v764
    %v1210 = vpack.c.b16 %v770, %v765
    %v1211 = vpack.c.b16 %v771, %v766
    %v1212 = vpack.c.b16 %v772, %v767
    %v1213 = vpack.c.b16 %v778, %v773
    %v1214 = vpack.c.b16 %v779, %v774
    %v1215 = vpack.c.b16 %v780, %v775
    %v1216 = vpack.c.b16 %v781, %v776
    %v1217 = vpack.c.b16 %v782, %v777
    %v1218 = vpack.c.b16 %v788, %v783
    %v1219 = vpack.c.b16 %v789, %v784
    %v1220 = vpack.c.b16 %v790, %v785
    %v1221 = vpack.c.b16 %v791, %v786
    %v1222 = vpack.c.b16 %v792, %v787
    %v1223 = vpack.c.b16 %v798, %v793
    %v1224 = vpack.c.b16 %v799, %v794
    %v1225 = vpack.c.b16 %v800, %v795
    %v1226 = vpack.c.b16 %v801, %v796
    %v1227 = vpack.c.b16 %v802, %v797
    %v1228 = vpack.c.b16 %v808, %v803
    %v1229 = vpack.c.b16 %v809, %v804
    %v1230 = vpack.c.b16 %v810, %v805
    %v1231 = vpack.c.b16 %v811, %v806
    %v1232 = vpack.c.b16 %v812, %v807
    %v1233 = vpack.c.b16 %v818, %v813
    %v1234 = vpack.c.b16 %v819, %v814
    %v1235 = vpack.c.b16 %v820, %v815
    %v1236 = vpack.c.b16 %v821, %v816
    %v1237 = vpack.c.b16 %v822, %v817
    %v1238 = vpack.c.b16 %v828, %v823
    %v1239 = vpack.c.b16 %v829, %v824
    %v1240 = vpack.c.b16 %v830, %v825
    %v1241 = vpack.c.b16 %v831, %v826
    %v1242 = vpack.c.b16 %v832, %v827
    %v1243 = vpack.c.b16 %v838, %v833
    %v1244 = vpack.c.b16 %v839, %v834
    %v1245 = vpack.c.b16 %v840, %v835
    %v1246 = vpack.c.b16 %v841, %v836
    %v1247 = vpack.c.b16 %v842, %v837
    %v1248 = vpack.c.b16 %v848, %v843
    %v1249 = vpack.c.b16 %v849, %v844
    %v1250 = vpack.c.b16 %v850, %v845
    %v1251 = vpack.c.b16 %v851, %v846
    %v1252 = vpack.c.b16 %v852, %v847
    %v1253 = vpack.c.b16 %v858, %v853
    %v1254 = vpack.c.b16 %v859, %v854
    %v1255 = vpack.c.b16 %v860, %v855
    %v1256 = vpack.c.b16 %v861, %v856
    %v1257 = vpack.c.b16 %v862, %v857
    %v1258 = vpack.c.b16 %v868, %v863
    %v1259 = vpack.c.b16 %v869, %v864
    %v1260 = vpack.c.b16 %v870, %v865
    %v1261 = vpack.c.b16 %v871, %v866
    %v1262 = vpack.c.b16 %v872, %v867
    %v1263 = vpack.c.b16 %v878, %v873
    %v1264 = vpack.c.b16 %v879, %v874
    %v1265 = vpack.c.b16 %v880, %v875
    %v1266 = vpack.c.b16 %v881, %v876
    %v1267 = vpack.c.b16 %v882, %v877
    %v1268 = vpack.c.b16 %v888, %v883
    %v1269 = vpack.c.b16 %v889, %v884
    %v1270 = vpack.c.b16 %v890, %v885
    %v1271 = vpack.c.b16 %v891, %v886
    %v1272 = vpack.c.b16 %v892, %v887
    %v1273 = vpack.c.b16 %v898, %v893
    %v1274 = vpack.c.b16 %v899, %v894
    %v1275 = vpack.c.b16 %v900, %v895
    %v1276 = vpack.c.b16 %v901, %v896
    %v1277 = vpack.c.b16 %v902, %v897
    %v1278 = vpack.c.b16 %v908, %v903
    %v1279 = vpack.c.b16 %v909, %v904
    %v1280 = vpack.c.b16 %v910, %v905
    %v1281 = vpack.c.b16 %v911, %v906
    %v1282 = vpack.c.b16 %v912, %v907
    %v1283 = vpack.c.b16 %v918, %v913
    %v1284 = vpack.c.b16 %v919, %v914
    %v1285 = vpack.c.b16 %v920, %v915
    %v1286 = vpack.c.b16 %v921, %v916
    %v1287 = vpack.c.b16 %v922, %v917
    %v1288 = vpack.c.b16 %v928, %v923
    %v1289 = vpack.c.b16 %v929, %v924
    %v1290 = vpack.c.b16 %v930, %v925
    %v1291 = vpack.c.b16 %v931, %v926
    %v1292 = vpack.c.b16 %v932, %v927
    %v1293 = vpack.c.b16 %v938, %v933
    %v1294 = vpack.c.b16 %v939, %v934
    %v1295 = vpack.c.b16 %v940, %v935
    %v1296 = vpack.c.b16 %v941, %v936
    %v1297 = vpack.c.b16 %v942, %v937
    %v1298 = vpack.c.b16 %v948, %v943
    %v1299 = vpack.c.b16 %v949, %v944
    %v1300 = vpack.c.b16 %v950, %v945
    %v1301 = vpack.c.b16 %v951, %v946
    %v1302 = vpack.c.b16 %v952, %v947
    %v1303 = vpack.c.b16 %v958, %v953
    %v1304 = vpack.c.b16 %v959, %v954
    %v1305 = vpack.c.b16 %v960, %v955
    %v1306 = vpack.c.b16 %v961, %v956
    %v1307 = vpack.c.b16 %v962, %v957
    %v1308 = vpack.c.b16 %v968, %v963
    %v1309 = vpack.c.b16 %v969, %v964
    %v1310 = vpack.c.b16 %v970, %v965
    %v1311 = vpack.c.b16 %v971, %v966
    %v1312 = vpack.c.b16 %v972, %v967
    %v1313 = vpack.c.b16 %v978, %v973
    %v1314 = vpack.c.b16 %v979, %v974
    %v1315 = vpack.c.b16 %v980, %v975
    %v1316 = vpack.c.b16 %v981, %v976
    %v1317 = vpack.c.b16 %v982, %v977
    %v1318 = vpack.c.b16 %v988, %v983
    %v1319 = vpack.c.b16 %v989, %v984
    %v1320 = vpack.c.b16 %v990, %v985
    %v1321 = vpack.c.b16 %v991, %v986
    %v1322 = vpack.c.b16 %v992, %v987
    %v1323 = vpack.c.b16 %v998, %v993
    %v1324 = vpack.c.b16 %v999, %v994
    %v1325 = vpack.c.b16 %v1000, %v995
    %v1326 = vpack.c.b16 %v1001, %v996
    %v1327 = vpack.c.b16 %v1002, %v997
    %v1328 = vpack.c.b16 %v1008, %v1003
    %v1329 = vpack.c.b16 %v1009, %v1004
    %v1330 = vpack.c.b16 %v1010, %v1005
    %v1331 = vpack.c.b16 %v1011, %v1006
    %v1332 = vpack.c.b16 %v1012, %v1007
    %v1333 = vpack.c.b16 %v1018, %v1013
    %v1334 = vpack.c.b16 %v1019, %v1014
    %v1335 = vpack.c.b16 %v1020, %v1015
    %v1336 = vpack.c.b16 %v1021, %v1016
    %v1337 = vpack.c.b16 %v1022, %v1017
    %v1338 = vpack.c.b16 %v1028, %v1023
    %v1339 = vpack.c.b16 %v1029, %v1024
    %v1340 = vpack.c.b16 %v1030, %v1025
    %v1341 = vpack.c.b16 %v1031, %v1026
    %v1342 = vpack.c.b16 %v1032, %v1027
    %v1343 = vpack.c.b16 %v1038, %v1033
    %v1344 = vpack.c.b16 %v1039, %v1034
    %v1345 = vpack.c.b16 %v1040, %v1035
    %v1346 = vpack.c.b16 %v1041, %v1036
    %v1347 = vpack.c.b16 %v1042, %v1037
    %v1348 = vpack.c.b16 %v1048, %v1043
    %v1349 = vpack.c.b16 %v1049, %v1044
    %v1350 = vpack.c.b16 %v1050, %v1045
    %v1351 = vpack.c.b16 %v1051, %v1046
    %v1352 = vpack.c.b16 %v1052, %v1047
    %v1353 = vpack.c.b16 %v1058, %v1053
    %v1354 = vpack.c.b16 %v1059, %v1054
    %v1355 = vpack.c.b16 %v1060, %v1055
    %v1356 = vpack.c.b16 %v1061, %v1056
    %v1357 = vpack.c.b16 %v1062, %v1057
    %v1358 = vpack.c.b16 %v1068, %v1063
    %v1359 = vpack.c.b16 %v1069, %v1064
    %v1360 = vpack.c.b16 %v1070, %v1065
    %v1361 = vpack.c.b16 %v1071, %v1066
    %v1362 = vpack.c.b16 %v1072, %v1067
    %v1363 = vpack.c.b16 %v1078, %v1073
    %v1364 = vpack.c.b16 %v1079, %v1074
    %v1365 = vpack.c.b16 %v1080, %v1075
    %v1366 = vpack.c.b16 %v1081, %v1076
    %v1367 = vpack.c.b16 %v1082, %v1077
    %v1368 = vpack.c.b16 %v1088, %v1083
    %v1369 = vpack.c.b16 %v1089, %v1084
    %v1370 = vpack.c.b16 %v1090, %v1085
    %v1371 = vpack.c.b16 %v1091, %v1086
    %v1372 = vpack.c.b16 %v1092, %v1087
    %v1373 = vpack.c.b16 %v1098, %v1093
    %v1374 = vpack.c.b16 %v1099, %v1094
    %v1375 = vpack.c.b16 %v1100, %v1095
    %v1376 = vpack.c.b16 %v1101, %v1096
    %v1377 = vpack.c.b16 %v1102, %v1097
    %v1378 = vpack.c.b16 %v1108, %v1103
    %v1379 = vpack.c.b16 %v1109, %v1104
    %v1380 = vpack.c.b16 %v1110, %v1105
    %v1381 = vpack.c.b16 %v1111, %v1106
    %v1382 = vpack.c.b16 %v1112, %v1107
    %v1383 = vpack.c.b16 %v1118, %v1113
    %v1384 = vpack.c.b16 %v1119, %v1114
    %v1385 = vpack.c.b16 %v1120, %v1115
    %v1386 = vpack.c.b16 %v1121, %v1116
    %v1387 = vpack.c.b16 %v1122, %v1117
    %v1388 = vpack.c.b16 %v1128, %v1123
    %v1389 = vpack.c.b16 %v1129, %v1124
    %v1390 = vpack.c.b16 %v1130, %v1125
    %v1391 = vpack.c.b16 %v1131, %v1126
    %v1392 = vpack.c.b16 %v1132, %v1127
    %v1393 = vpack.c.b16 %v1138, %v1133
    %v1394 = vpack.c.b16 %v1139, %v1134
    %v1395 = vpack.c.b16 %v1140, %v1135
    %v1396 = vpack.c.b16 %v1141, %v1136
    %v1397 = vpack.c.b16 %v1142, %v1137
    %v1398 = vpack.c.b16 %v1148, %v1143
    %v1399 = vpack.c.b16 %v1149, %v1144
    %v1400 = vpack.c.b16 %v1150, %v1145
    %v1401 = vpack.c.b16 %v1151, %v1146
    %v1402 = vpack.c.b16 %v1152, %v1147
    %v1403 = vpack.c.b16 %v1158, %v1153
    %v1404 = vpack.c.b16 %v1159, %v1154
    %v1405 = vpack.c.b16 %v1160, %v1155
    %v1406 = vpack.c.b16 %v1161, %v1156
    %v1407 = vpack.c.b16 %v1162, %v1157
    %vm1653 = vcmask 130048
    %v1655 = vsel %vm1653, %v72, 0
    %1657 = vmatpush.bf16.msra.mxu0 %v1198
    %1658 = vmatpush.bf16.msra.mxu0 %v1193
    %1659 = vmatpush.bf16.msra.mxu0 %v1188
    %1660 = vmatpush.bf16.msra.mxu0 %v1183
    %1661 = vmatpush.bf16.msra.mxu0 %v1178
    %1662 = vmatpush.bf16.msra.mxu0 %v1173
    %1663 = vmatpush.bf16.msra.mxu0 %v1168
    %1664 = vmatpush.bf16.msra.mxu0 %v1163
    %1665 = vmatmul.bf16.gmra.mxu0 %v66
    %v1666 = vpop.f32.mrf.mxu0
    %v1667 = vadd.f32 %v369, %v1666
    %v1668 = vpop.f32.mrf.mxu0
    %1669 = vdwg.mxu0
    %1670 = vmatpush.bf16.msra.mxu0 %v1238
    %1671 = vmatpush.bf16.msra.mxu0 %v1233
    %1672 = vmatpush.bf16.msra.mxu0 %v1228
    %1673 = vmatpush.bf16.msra.mxu0 %v1223
    %1674 = vmatpush.bf16.msra.mxu0 %v1218
    %1675 = vmatpush.bf16.msra.mxu0 %v1213
    %1676 = vmatpush.bf16.msra.mxu0 %v1208
    %1677 = vmatpush.bf16.msra.mxu0 %v1203
    %1678 = vmatmul.bf16.gmra.mxu0 %v67
    %v1679 = vpop.f32.mrf.mxu0
    %v1680 = vadd.f32 %v1667, %v1679
    %v1681 = vpop.f32.mrf.mxu0
    %1682 = vdwg.mxu0
    %1683 = vmatpush.bf16.msra.mxu0 %v1278
    %1684 = vmatpush.bf16.msra.mxu0 %v1273
    %1685 = vmatpush.bf16.msra.mxu0 %v1268
    %1686 = vmatpush.bf16.msra.mxu0 %v1263
    %1687 = vmatpush.bf16.msra.mxu0 %v1258
    %1688 = vmatpush.bf16.msra.mxu0 %v1253
    %1689 = vmatpush.bf16.msra.mxu0 %v1248
    %1690 = vmatpush.bf16.msra.mxu0 %v1243
    %1691 = vmatmul.bf16.gmra.mxu0 %v68
    %v1692 = vpop.f32.mrf.mxu0
    %v1693 = vadd.f32 %v1680, %v1692
    %v1694 = vpop.f32.mrf.mxu0
    %1695 = vdwg.mxu0
    %1696 = vmatpush.bf16.msra.mxu0 %v1318
    %1697 = vmatpush.bf16.msra.mxu0 %v1313
    %1698 = vmatpush.bf16.msra.mxu0 %v1308
    %1699 = vmatpush.bf16.msra.mxu0 %v1303
    %1700 = vmatpush.bf16.msra.mxu0 %v1298
    %1701 = vmatpush.bf16.msra.mxu0 %v1293
    %1702 = vmatpush.bf16.msra.mxu0 %v1288
    %1703 = vmatpush.bf16.msra.mxu0 %v1283
    %1704 = vmatmul.bf16.gmra.mxu0 %v69
    %v1705 = vpop.f32.mrf.mxu0
    %v1706 = vadd.f32 %v1693, %v1705
    %v1707 = vpop.f32.mrf.mxu0
    %1708 = vdwg.mxu0
    %1709 = vmatpush.bf16.msra.mxu0 %v1358
    %1710 = vmatpush.bf16.msra.mxu0 %v1353
    %1711 = vmatpush.bf16.msra.mxu0 %v1348
    %1712 = vmatpush.bf16.msra.mxu0 %v1343
    %1713 = vmatpush.bf16.msra.mxu0 %v1338
    %1714 = vmatpush.bf16.msra.mxu0 %v1333
    %1715 = vmatpush.bf16.msra.mxu0 %v1328
    %1716 = vmatpush.bf16.msra.mxu0 %v1323
    %1717 = vmatmul.bf16.gmra.mxu0 %v70
    %v1718 = vpop.f32.mrf.mxu0
    %v1719 = vadd.f32 %v1706, %v1718
    %v1720 = vpop.f32.mrf.mxu0
    %1721 = vdwg.mxu0
    %1722 = vmatpush.bf16.msra.mxu0 %v1398
    %1723 = vmatpush.bf16.msra.mxu0 %v1393
    %1724 = vmatpush.bf16.msra.mxu0 %v1388
    %1725 = vmatpush.bf16.msra.mxu0 %v1383
    %1726 = vmatpush.bf16.msra.mxu0 %v1378
    %1727 = vmatpush.bf16.msra.mxu0 %v1373
    %1728 = vmatpush.bf16.msra.mxu0 %v1368
    %1729 = vmatpush.bf16.msra.mxu0 %v1363
    %1730 = vmatmul.bf16.gmra.mxu0 %v71
    %v1731 = vpop.f32.mrf.mxu0
    %v1732 = vadd.f32 %v1719, %v1731
    %v1733 = vpop.f32.mrf.mxu0
    %1734 = vdwg.mxu0
    %1735 = vmatpush.bf16.msra.mxu0 0
    %1736 = vmatpush.bf16.msra.mxu0 0
    %1737 = vmatpush.bf16.msra.mxu0 0
    %1738 = vmatpush.bf16.msra.mxu0 0
    %1739 = vmatpush.bf16.msra.mxu0 0
    %1740 = vmatpush.bf16.msra.mxu0 0
    %1741 = vmatpush.bf16.msra.mxu0 0
    %1742 = vmatpush.bf16.msra.mxu0 %v1403
    %1743 = vmatmul.bf16.gmra.mxu0 %v1655
    %v1744 = vpop.f32.mrf.mxu0
    %v1745 = vadd.f32 %v1732, %v1744
    %v1746 = vpop.f32.mrf.mxu0
    %1747 = vdwg.mxu0
    %1748 = vmatpush.bf16.msra.mxu0 %v1199
    %1749 = vmatpush.bf16.msra.mxu0 %v1194
    %1750 = vmatpush.bf16.msra.mxu0 %v1189
    %1751 = vmatpush.bf16.msra.mxu0 %v1184
    %1752 = vmatpush.bf16.msra.mxu0 %v1179
    %1753 = vmatpush.bf16.msra.mxu0 %v1174
    %1754 = vmatpush.bf16.msra.mxu0 %v1169
    %1755 = vmatpush.bf16.msra.mxu0 %v1164
    %1756 = vmatmul.bf16.gmra.mxu0 %v66
    %v1757 = vpop.f32.mrf.mxu0
    %v1758 = vadd.f32 %v370, %v1757
    %v1759 = vpop.f32.mrf.mxu0
    %1760 = vdwg.mxu0
    %1761 = vmatpush.bf16.msra.mxu0 %v1239
    %1762 = vmatpush.bf16.msra.mxu0 %v1234
    %1763 = vmatpush.bf16.msra.mxu0 %v1229
    %1764 = vmatpush.bf16.msra.mxu0 %v1224
    %1765 = vmatpush.bf16.msra.mxu0 %v1219
    %1766 = vmatpush.bf16.msra.mxu0 %v1214
    %1767 = vmatpush.bf16.msra.mxu0 %v1209
    %1768 = vmatpush.bf16.msra.mxu0 %v1204
    %1769 = vmatmul.bf16.gmra.mxu0 %v67
    %v1770 = vpop.f32.mrf.mxu0
    %v1771 = vadd.f32 %v1758, %v1770
    %v1772 = vpop.f32.mrf.mxu0
    %1773 = vdwg.mxu0
    %1774 = vmatpush.bf16.msra.mxu0 %v1279
    %1775 = vmatpush.bf16.msra.mxu0 %v1274
    %1776 = vmatpush.bf16.msra.mxu0 %v1269
    %1777 = vmatpush.bf16.msra.mxu0 %v1264
    %1778 = vmatpush.bf16.msra.mxu0 %v1259
    %1779 = vmatpush.bf16.msra.mxu0 %v1254
    %1780 = vmatpush.bf16.msra.mxu0 %v1249
    %1781 = vmatpush.bf16.msra.mxu0 %v1244
    %1782 = vmatmul.bf16.gmra.mxu0 %v68
    %v1783 = vpop.f32.mrf.mxu0
    %v1784 = vadd.f32 %v1771, %v1783
    %v1785 = vpop.f32.mrf.mxu0
    %1786 = vdwg.mxu0
    %1787 = vmatpush.bf16.msra.mxu0 %v1319
    %1788 = vmatpush.bf16.msra.mxu0 %v1314
    %1789 = vmatpush.bf16.msra.mxu0 %v1309
    %1790 = vmatpush.bf16.msra.mxu0 %v1304
    %1791 = vmatpush.bf16.msra.mxu0 %v1299
    %1792 = vmatpush.bf16.msra.mxu0 %v1294
    %1793 = vmatpush.bf16.msra.mxu0 %v1289
    %1794 = vmatpush.bf16.msra.mxu0 %v1284
    %1795 = vmatmul.bf16.gmra.mxu0 %v69
    %v1796 = vpop.f32.mrf.mxu0
    %v1797 = vadd.f32 %v1784, %v1796
    %v1798 = vpop.f32.mrf.mxu0
    %1799 = vdwg.mxu0
    %1800 = vmatpush.bf16.msra.mxu0 %v1359
    %1801 = vmatpush.bf16.msra.mxu0 %v1354
    %1802 = vmatpush.bf16.msra.mxu0 %v1349
    %1803 = vmatpush.bf16.msra.mxu0 %v1344
    %1804 = vmatpush.bf16.msra.mxu0 %v1339
    %1805 = vmatpush.bf16.msra.mxu0 %v1334
    %1806 = vmatpush.bf16.msra.mxu0 %v1329
    %1807 = vmatpush.bf16.msra.mxu0 %v1324
    %1808 = vmatmul.bf16.gmra.mxu0 %v70
    %v1809 = vpop.f32.mrf.mxu0
    %v1810 = vadd.f32 %v1797, %v1809
    %v1811 = vpop.f32.mrf.mxu0
    %1812 = vdwg.mxu0
    %1813 = vmatpush.bf16.msra.mxu0 %v1399
    %1814 = vmatpush.bf16.msra.mxu0 %v1394
    %1815 = vmatpush.bf16.msra.mxu0 %v1389
    %1816 = vmatpush.bf16.msra.mxu0 %v1384
    %1817 = vmatpush.bf16.msra.mxu0 %v1379
    %1818 = vmatpush.bf16.msra.mxu0 %v1374
    %1819 = vmatpush.bf16.msra.mxu0 %v1369
    %1820 = vmatpush.bf16.msra.mxu0 %v1364
    %1821 = vmatmul.bf16.gmra.mxu0 %v71
    %v1822 = vpop.f32.mrf.mxu0
    %v1823 = vadd.f32 %v1810, %v1822
    %v1824 = vpop.f32.mrf.mxu0
    %1825 = vdwg.mxu0
    %1826 = vmatpush.bf16.msra.mxu0 0
    %1827 = vmatpush.bf16.msra.mxu0 0
    %1828 = vmatpush.bf16.msra.mxu0 0
    %1829 = vmatpush.bf16.msra.mxu0 0
    %1830 = vmatpush.bf16.msra.mxu0 0
    %1831 = vmatpush.bf16.msra.mxu0 0
    %1832 = vmatpush.bf16.msra.mxu0 0
    %1833 = vmatpush.bf16.msra.mxu0 %v1404
    %1834 = vmatmul.bf16.gmra.mxu0 %v1655
    %v1835 = vpop.f32.mrf.mxu0
    %v1836 = vadd.f32 %v1823, %v1835
    %v1837 = vpop.f32.mrf.mxu0
    %1838 = vdwg.mxu0
    %1839 = vmatpush.bf16.msra.mxu0 %v1200
    %1840 = vmatpush.bf16.msra.mxu0 %v1195
    %1841 = vmatpush.bf16.msra.mxu0 %v1190
    %1842 = vmatpush.bf16.msra.mxu0 %v1185
    %1843 = vmatpush.bf16.msra.mxu0 %v1180
    %1844 = vmatpush.bf16.msra.mxu0 %v1175
    %1845 = vmatpush.bf16.msra.mxu0 %v1170
    %1846 = vmatpush.bf16.msra.mxu0 %v1165
    %1847 = vmatmul.bf16.gmra.mxu0 %v66
    %v1848 = vpop.f32.mrf.mxu0
    %v1849 = vadd.f32 %v371, %v1848
    %v1850 = vpop.f32.mrf.mxu0
    %1851 = vdwg.mxu0
    %1852 = vmatpush.bf16.msra.mxu0 %v1240
    %1853 = vmatpush.bf16.msra.mxu0 %v1235
    %1854 = vmatpush.bf16.msra.mxu0 %v1230
    %1855 = vmatpush.bf16.msra.mxu0 %v1225
    %1856 = vmatpush.bf16.msra.mxu0 %v1220
    %1857 = vmatpush.bf16.msra.mxu0 %v1215
    %1858 = vmatpush.bf16.msra.mxu0 %v1210
    %1859 = vmatpush.bf16.msra.mxu0 %v1205
    %1860 = vmatmul.bf16.gmra.mxu0 %v67
    %v1861 = vpop.f32.mrf.mxu0
    %v1862 = vadd.f32 %v1849, %v1861
    %v1863 = vpop.f32.mrf.mxu0
    %1864 = vdwg.mxu0
    %1865 = vmatpush.bf16.msra.mxu0 %v1280
    %1866 = vmatpush.bf16.msra.mxu0 %v1275
    %1867 = vmatpush.bf16.msra.mxu0 %v1270
    %1868 = vmatpush.bf16.msra.mxu0 %v1265
    %1869 = vmatpush.bf16.msra.mxu0 %v1260
    %1870 = vmatpush.bf16.msra.mxu0 %v1255
    %1871 = vmatpush.bf16.msra.mxu0 %v1250
    %1872 = vmatpush.bf16.msra.mxu0 %v1245
    %1873 = vmatmul.bf16.gmra.mxu0 %v68
    %v1874 = vpop.f32.mrf.mxu0
    %v1875 = vadd.f32 %v1862, %v1874
    %v1876 = vpop.f32.mrf.mxu0
    %1877 = vdwg.mxu0
    %1878 = vmatpush.bf16.msra.mxu0 %v1320
    %1879 = vmatpush.bf16.msra.mxu0 %v1315
    %1880 = vmatpush.bf16.msra.mxu0 %v1310
    %1881 = vmatpush.bf16.msra.mxu0 %v1305
    %1882 = vmatpush.bf16.msra.mxu0 %v1300
    %1883 = vmatpush.bf16.msra.mxu0 %v1295
    %1884 = vmatpush.bf16.msra.mxu0 %v1290
    %1885 = vmatpush.bf16.msra.mxu0 %v1285
    %1886 = vmatmul.bf16.gmra.mxu0 %v69
    %v1887 = vpop.f32.mrf.mxu0
    %v1888 = vadd.f32 %v1875, %v1887
    %v1889 = vpop.f32.mrf.mxu0
    %1890 = vdwg.mxu0
    %1891 = vmatpush.bf16.msra.mxu0 %v1360
    %1892 = vmatpush.bf16.msra.mxu0 %v1355
    %1893 = vmatpush.bf16.msra.mxu0 %v1350
    %1894 = vmatpush.bf16.msra.mxu0 %v1345
    %1895 = vmatpush.bf16.msra.mxu0 %v1340
    %1896 = vmatpush.bf16.msra.mxu0 %v1335
    %1897 = vmatpush.bf16.msra.mxu0 %v1330
    %1898 = vmatpush.bf16.msra.mxu0 %v1325
    %1899 = vmatmul.bf16.gmra.mxu0 %v70
    %v1900 = vpop.f32.mrf.mxu0
    %v1901 = vadd.f32 %v1888, %v1900
    %v1902 = vpop.f32.mrf.mxu0
    %1903 = vdwg.mxu0
    %1904 = vmatpush.bf16.msra.mxu0 %v1400
    %1905 = vmatpush.bf16.msra.mxu0 %v1395
    %1906 = vmatpush.bf16.msra.mxu0 %v1390
    %1907 = vmatpush.bf16.msra.mxu0 %v1385
    %1908 = vmatpush.bf16.msra.mxu0 %v1380
    %1909 = vmatpush.bf16.msra.mxu0 %v1375
    %1910 = vmatpush.bf16.msra.mxu0 %v1370
    %1911 = vmatpush.bf16.msra.mxu0 %v1365
    %1912 = vmatmul.bf16.gmra.mxu0 %v71
    %v1913 = vpop.f32.mrf.mxu0
    %v1914 = vadd.f32 %v1901, %v1913
    %v1915 = vpop.f32.mrf.mxu0
    %1916 = vdwg.mxu0
    %1917 = vmatpush.bf16.msra.mxu0 0
    %1918 = vmatpush.bf16.msra.mxu0 0
    %1919 = vmatpush.bf16.msra.mxu0 0
    %1920 = vmatpush.bf16.msra.mxu0 0
    %1921 = vmatpush.bf16.msra.mxu0 0
    %1922 = vmatpush.bf16.msra.mxu0 0
    %1923 = vmatpush.bf16.msra.mxu0 0
    %1924 = vmatpush.bf16.msra.mxu0 %v1405
    %1925 = vmatmul.bf16.gmra.mxu0 %v1655
    %v1926 = vpop.f32.mrf.mxu0
    %v1927 = vadd.f32 %v1914, %v1926
    %v1928 = vpop.f32.mrf.mxu0
    %1929 = vdwg.mxu0
    %1930 = vmatpush.bf16.msra.mxu0 %v1201
    %1931 = vmatpush.bf16.msra.mxu0 %v1196
    %1932 = vmatpush.bf16.msra.mxu0 %v1191
    %1933 = vmatpush.bf16.msra.mxu0 %v1186
    %1934 = vmatpush.bf16.msra.mxu0 %v1181
    %1935 = vmatpush.bf16.msra.mxu0 %v1176
    %1936 = vmatpush.bf16.msra.mxu0 %v1171
    %1937 = vmatpush.bf16.msra.mxu0 %v1166
    %1938 = vmatmul.bf16.gmra.mxu0 %v66
    %v1939 = vpop.f32.mrf.mxu0
    %v1940 = vadd.f32 %v372, %v1939
    %v1941 = vpop.f32.mrf.mxu0
    %1942 = vdwg.mxu0
    %1943 = vmatpush.bf16.msra.mxu0 %v1241
    %1944 = vmatpush.bf16.msra.mxu0 %v1236
    %1945 = vmatpush.bf16.msra.mxu0 %v1231
    %1946 = vmatpush.bf16.msra.mxu0 %v1226
    %1947 = vmatpush.bf16.msra.mxu0 %v1221
    %1948 = vmatpush.bf16.msra.mxu0 %v1216
    %1949 = vmatpush.bf16.msra.mxu0 %v1211
    %1950 = vmatpush.bf16.msra.mxu0 %v1206
    %1951 = vmatmul.bf16.gmra.mxu0 %v67
    %v1952 = vpop.f32.mrf.mxu0
    %v1953 = vadd.f32 %v1940, %v1952
    %v1954 = vpop.f32.mrf.mxu0
    %1955 = vdwg.mxu0
    %1956 = vmatpush.bf16.msra.mxu0 %v1281
    %1957 = vmatpush.bf16.msra.mxu0 %v1276
    %1958 = vmatpush.bf16.msra.mxu0 %v1271
    %1959 = vmatpush.bf16.msra.mxu0 %v1266
    %1960 = vmatpush.bf16.msra.mxu0 %v1261
    %1961 = vmatpush.bf16.msra.mxu0 %v1256
    %1962 = vmatpush.bf16.msra.mxu0 %v1251
    %1963 = vmatpush.bf16.msra.mxu0 %v1246
    %1964 = vmatmul.bf16.gmra.mxu0 %v68
    %v1965 = vpop.f32.mrf.mxu0
    %v1966 = vadd.f32 %v1953, %v1965
    %v1967 = vpop.f32.mrf.mxu0
    %1968 = vdwg.mxu0
    %1969 = vmatpush.bf16.msra.mxu0 %v1321
    %1970 = vmatpush.bf16.msra.mxu0 %v1316
    %1971 = vmatpush.bf16.msra.mxu0 %v1311
    %1972 = vmatpush.bf16.msra.mxu0 %v1306
    %1973 = vmatpush.bf16.msra.mxu0 %v1301
    %1974 = vmatpush.bf16.msra.mxu0 %v1296
    %1975 = vmatpush.bf16.msra.mxu0 %v1291
    %1976 = vmatpush.bf16.msra.mxu0 %v1286
    %1977 = vmatmul.bf16.gmra.mxu0 %v69
    %v1978 = vpop.f32.mrf.mxu0
    %v1979 = vadd.f32 %v1966, %v1978
    %v1980 = vpop.f32.mrf.mxu0
    %1981 = vdwg.mxu0
    %1982 = vmatpush.bf16.msra.mxu0 %v1361
    %1983 = vmatpush.bf16.msra.mxu0 %v1356
    %1984 = vmatpush.bf16.msra.mxu0 %v1351
    %1985 = vmatpush.bf16.msra.mxu0 %v1346
    %1986 = vmatpush.bf16.msra.mxu0 %v1341
    %1987 = vmatpush.bf16.msra.mxu0 %v1336
    %1988 = vmatpush.bf16.msra.mxu0 %v1331
    %1989 = vmatpush.bf16.msra.mxu0 %v1326
    %1990 = vmatmul.bf16.gmra.mxu0 %v70
    %v1991 = vpop.f32.mrf.mxu0
    %v1992 = vadd.f32 %v1979, %v1991
    %v1993 = vpop.f32.mrf.mxu0
    %1994 = vdwg.mxu0
    %1995 = vmatpush.bf16.msra.mxu0 %v1401
    %1996 = vmatpush.bf16.msra.mxu0 %v1396
    %1997 = vmatpush.bf16.msra.mxu0 %v1391
    %1998 = vmatpush.bf16.msra.mxu0 %v1386
    %1999 = vmatpush.bf16.msra.mxu0 %v1381
    %2000 = vmatpush.bf16.msra.mxu0 %v1376
    %2001 = vmatpush.bf16.msra.mxu0 %v1371
    %2002 = vmatpush.bf16.msra.mxu0 %v1366
    %2003 = vmatmul.bf16.gmra.mxu0 %v71
    %v2004 = vpop.f32.mrf.mxu0
    %v2005 = vadd.f32 %v1992, %v2004
    %v2006 = vpop.f32.mrf.mxu0
    %2007 = vdwg.mxu0
    %2008 = vmatpush.bf16.msra.mxu0 0
    %2009 = vmatpush.bf16.msra.mxu0 0
    %2010 = vmatpush.bf16.msra.mxu0 0
    %2011 = vmatpush.bf16.msra.mxu0 0
    %2012 = vmatpush.bf16.msra.mxu0 0
    %2013 = vmatpush.bf16.msra.mxu0 0
    %2014 = vmatpush.bf16.msra.mxu0 0
    %2015 = vmatpush.bf16.msra.mxu0 %v1406
    %2016 = vmatmul.bf16.gmra.mxu0 %v1655
    %v2017 = vpop.f32.mrf.mxu0
    %v2018 = vadd.f32 %v2005, %v2017
    %v2019 = vpop.f32.mrf.mxu0
    %2020 = vdwg.mxu0
    %2021 = vmatpush.bf16.msra.mxu0 %v1202
    %2022 = vmatpush.bf16.msra.mxu0 %v1197
    %2023 = vmatpush.bf16.msra.mxu0 %v1192
    %2024 = vmatpush.bf16.msra.mxu0 %v1187
    %2025 = vmatpush.bf16.msra.mxu0 %v1182
    %2026 = vmatpush.bf16.msra.mxu0 %v1177
    %2027 = vmatpush.bf16.msra.mxu0 %v1172
    %2028 = vmatpush.bf16.msra.mxu0 %v1167
    %2029 = vmatmul.bf16.gmra.mxu0 %v66
    %v2030 = vpop.f32.mrf.mxu0
    %v2031 = vadd.f32 %v373, %v2030
    %v2032 = vpop.f32.mrf.mxu0
    %2033 = vdwg.mxu0
    %2034 = vmatpush.bf16.msra.mxu0 %v1242
    %2035 = vmatpush.bf16.msra.mxu0 %v1237
    %2036 = vmatpush.bf16.msra.mxu0 %v1232
    %2037 = vmatpush.bf16.msra.mxu0 %v1227
    %2038 = vmatpush.bf16.msra.mxu0 %v1222
    %2039 = vmatpush.bf16.msra.mxu0 %v1217
    %2040 = vmatpush.bf16.msra.mxu0 %v1212
    %2041 = vmatpush.bf16.msra.mxu0 %v1207
    %2042 = vmatmul.bf16.gmra.mxu0 %v67
    %v2043 = vpop.f32.mrf.mxu0
    %v2044 = vadd.f32 %v2031, %v2043
    %v2045 = vpop.f32.mrf.mxu0
    %2046 = vdwg.mxu0
    %2047 = vmatpush.bf16.msra.mxu0 %v1282
    %2048 = vmatpush.bf16.msra.mxu0 %v1277
    %2049 = vmatpush.bf16.msra.mxu0 %v1272
    %2050 = vmatpush.bf16.msra.mxu0 %v1267
    %2051 = vmatpush.bf16.msra.mxu0 %v1262
    %2052 = vmatpush.bf16.msra.mxu0 %v1257
    %2053 = vmatpush.bf16.msra.mxu0 %v1252
    %2054 = vmatpush.bf16.msra.mxu0 %v1247
    %2055 = vmatmul.bf16.gmra.mxu0 %v68
    %v2056 = vpop.f32.mrf.mxu0
    %v2057 = vadd.f32 %v2044, %v2056
    %v2058 = vpop.f32.mrf.mxu0
    %2059 = vdwg.mxu0
    %2060 = vmatpush.bf16.msra.mxu0 %v1322
    %2061 = vmatpush.bf16.msra.mxu0 %v1317
    %2062 = vmatpush.bf16.msra.mxu0 %v1312
    %2063 = vmatpush.bf16.msra.mxu0 %v1307
    %2064 = vmatpush.bf16.msra.mxu0 %v1302
    %2065 = vmatpush.bf16.msra.mxu0 %v1297
    %2066 = vmatpush.bf16.msra.mxu0 %v1292
    %2067 = vmatpush.bf16.msra.mxu0 %v1287
    %2068 = vmatmul.bf16.gmra.mxu0 %v69
    %v2069 = vpop.f32.mrf.mxu0
    %v2070 = vadd.f32 %v2057, %v2069
    %v2071 = vpop.f32.mrf.mxu0
    %2072 = vdwg.mxu0
    %2073 = vmatpush.bf16.msra.mxu0 %v1362
    %2074 = vmatpush.bf16.msra.mxu0 %v1357
    %2075 = vmatpush.bf16.msra.mxu0 %v1352
    %2076 = vmatpush.bf16.msra.mxu0 %v1347
    %2077 = vmatpush.bf16.msra.mxu0 %v1342
    %2078 = vmatpush.bf16.msra.mxu0 %v1337
    %2079 = vmatpush.bf16.msra.mxu0 %v1332
    %2080 = vmatpush.bf16.msra.mxu0 %v1327
    %2081 = vmatmul.bf16.gmra.mxu0 %v70
    %v2082 = vpop.f32.mrf.mxu0
    %v2083 = vadd.f32 %v2070, %v2082
    %v2084 = vpop.f32.mrf.mxu0
    %2085 = vdwg.mxu0
    %2086 = vmatpush.bf16.msra.mxu0 %v1402
    %2087 = vmatpush.bf16.msra.mxu0 %v1397
    %2088 = vmatpush.bf16.msra.mxu0 %v1392
    %2089 = vmatpush.bf16.msra.mxu0 %v1387
    %2090 = vmatpush.bf16.msra.mxu0 %v1382
    %2091 = vmatpush.bf16.msra.mxu0 %v1377
    %2092 = vmatpush.bf16.msra.mxu0 %v1372
    %2093 = vmatpush.bf16.msra.mxu0 %v1367
    %2094 = vmatmul.bf16.gmra.mxu0 %v71
    %v2095 = vpop.f32.mrf.mxu0
    %v2096 = vadd.f32 %v2083, %v2095
    %v2097 = vpop.f32.mrf.mxu0
    %2098 = vdwg.mxu0
    %2099 = vmatpush.bf16.msra.mxu0 0
    %2100 = vmatpush.bf16.msra.mxu0 0
    %2101 = vmatpush.bf16.msra.mxu0 0
    %2102 = vmatpush.bf16.msra.mxu0 0
    %2103 = vmatpush.bf16.msra.mxu0 0
    %2104 = vmatpush.bf16.msra.mxu0 0
    %2105 = vmatpush.bf16.msra.mxu0 0
    %2106 = vmatpush.bf16.msra.mxu0 %v1407
    %2107 = vmatmul.bf16.gmra.mxu0 %v1655
    %v2108 = vpop.f32.mrf.mxu0
    %v2109 = vadd.f32 %v2096, %v2108
    %v2110 = vpop.f32.mrf.mxu0
    %2111 = vdwg.mxu0
    %v2112 = vmax.f32 %v1745, 0.0
    %v2113 = vmax.f32 %v1836, 0.0
    %v2114 = vmax.f32 %v1927, 0.0
    %v2115 = vmax.f32 %v2018, 0.0
    %v2116 = vmax.f32 %v2109, 0.0
    %v2117 = vpack.c.bf16 %v2112, %v2112
    %v2118 = vpack.c.bf16 %v2113, %v2113
    %v2119 = vpack.c.bf16 %v2114, %v2114
    %v2120 = vpack.c.bf16 %v2115, %v2115
    %v2121 = vpack.c.bf16 %v2116, %v2116
    %v2122 = vld [vmem:[#allocation4] sm:$0xff]
    %v2123 = vld [vmem:[#allocation4 + $0x8] sm:$0xf]
    %v2124 = vld [vmem:[#allocation4 + $0xc] sm:$0xff]
    %v2125 = vld [vmem:[#allocation4 + $0x14] sm:$0xf]
    %v2126 = vld [vmem:[#allocation4 + $0x18] sm:$0xff]
    %v2127 = vld [vmem:[#allocation4 + $0x20] sm:$0xf]
    %v2128 = vld [vmem:[#allocation4 + $0x24] sm:$0xff]
    %v2129 = vld [vmem:[#allocation4 + $0x2c] sm:$0xf]
    %v2130 = vld [vmem:[#allocation4 + $0x30] sm:$0xff]
    %v2131 = vld [vmem:[#allocation4 + $0x38] sm:$0xf]
    %v2132 = vld [vmem:[#allocation4 + $0x3c] sm:$0xff]
    %v2133 = vld [vmem:[#allocation4 + $0x44] sm:$0xf]
    %v2134 = vld [vmem:[#allocation4 + $0x48] sm:$0xff]
    %v2135 = vld [vmem:[#allocation4 + $0x50] sm:$0xf]
    %v2136 = vld [vmem:[#allocation4 + $0x54] sm:$0xff]
    %v2137 = vld [vmem:[#allocation4 + $0x5c] sm:$0xf]
    %v2138 = vld [vmem:[#allocation4 + $0x60] sm:$0xff]
    %v2139 = vld [vmem:[#allocation4 + $0x68] sm:$0xf]
    %v2140 = vld [vmem:[#allocation4 + $0x6c] sm:$0xff]
    %v2141 = vld [vmem:[#allocation4 + $0x74] sm:$0xf]
    %v2142 = vld [vmem:[#allocation4 + $0x78] sm:$0xff]
    %v2143 = vld [vmem:[#allocation4 + $0x80] sm:$0xf]
    %v2144 = vld [vmem:[#allocation4 + $0x84] sm:$0xff]
    %v2145 = vld [vmem:[#allocation4 + $0x8c] sm:$0xf]
    %v2146 = vld [vmem:[#allocation4 + $0x90] sm:$0xff]
    %v2147 = vld [vmem:[#allocation4 + $0x98] sm:$0xf]
    %v2148 = vld [vmem:[#allocation4 + $0x9c] sm:$0xff]
    %v2149 = vld [vmem:[#allocation4 + $0xa4] sm:$0xf]
    %v2150 = vld [vmem:[#allocation4 + $0xa8] sm:$0xff]
    %v2151 = vld [vmem:[#allocation4 + $0xb0] sm:$0xf]
    %v2152 = vld [vmem:[#allocation4 + $0xb4] sm:$0xff]
    %v2153 = vld [vmem:[#allocation4 + $0xbc] sm:$0xf]
    %v2154 = vld [vmem:[#allocation4 + $0xc0] sm:$0xff]
    %v2155 = vld [vmem:[#allocation4 + $0xc8] sm:$0xf]
    %v2156 = vld [vmem:[#allocation4 + $0xcc] sm:$0xff]
    %v2157 = vld [vmem:[#allocation4 + $0xd4] sm:$0xf]
    %v2158 = vld [vmem:[#allocation4 + $0xd8] sm:$0xff]
    %v2159 = vld [vmem:[#allocation4 + $0xe0] sm:$0xf]
    %v2160 = vld [vmem:[#allocation4 + $0xe4] sm:$0xff]
    %v2161 = vld [vmem:[#allocation4 + $0xec] sm:$0xf]
    %v2162 = vld [vmem:[#allocation4 + $0xf0] sm:$0xff]
    %v2163 = vld [vmem:[#allocation4 + $0xf8] sm:$0xf]
    %v2164 = vld [vmem:[#allocation4 + $0xfc] sm:$0xff]
    %v2165 = vld [vmem:[#allocation4 + $0x104] sm:$0xf]
    %v2166 = vld [vmem:[#allocation4 + $0x108] sm:$0xff]
    %v2167 = vld [vmem:[#allocation4 + $0x110] sm:$0xf]
    %v2168 = vld [vmem:[#allocation4 + $0x114] sm:$0xff]
    %v2169 = vld [vmem:[#allocation4 + $0x11c] sm:$0xf]
    %v2170 = vld [vmem:[#allocation4 + $0x120] sm:$0xff]
    %v2171 = vld [vmem:[#allocation4 + $0x128] sm:$0xf]
    %v2172 = vld [vmem:[#allocation4 + $0x12c] sm:$0xff]
    %v2173 = vld [vmem:[#allocation4 + $0x134] sm:$0xf]
    %v2174 = vld [vmem:[#allocation4 + $0x138] sm:$0xff]
    %v2175 = vld [vmem:[#allocation4 + $0x140] sm:$0xf]
    %v2176 = vld [vmem:[#allocation4 + $0x144] sm:$0xff]
    %v2177 = vld [vmem:[#allocation4 + $0x14c] sm:$0xf]
    %v2178 = vld [vmem:[#allocation4 + $0x150] sm:$0xff]
    %v2179 = vld [vmem:[#allocation4 + $0x158] sm:$0xf]
    %v2180 = vld [vmem:[#allocation4 + $0x15c] sm:$0xff]
    %v2181 = vld [vmem:[#allocation4 + $0x164] sm:$0xf]
    %v2182 = vld [vmem:[#allocation4 + $0x168] sm:$0xff]
    %v2183 = vld [vmem:[#allocation4 + $0x170] sm:$0xf]
    %v2184 = vld [vmem:[#allocation4 + $0x174] sm:$0xff]
    %v2185 = vld [vmem:[#allocation4 + $0x17c] sm:$0xf]
    %v2186 = vld [vmem:[#allocation4 + $0x180] sm:$0xff]
    %v2187 = vld [vmem:[#allocation4 + $0x188] sm:$0xf]
    %v2188 = vld [vmem:[#allocation4 + $0x18c] sm:$0xff]
    %v2189 = vld [vmem:[#allocation4 + $0x194] sm:$0xf]
    %v2190 = vld [vmem:[#allocation4 + $0x198] sm:$0xff]
    %v2191 = vld [vmem:[#allocation4 + $0x1a0] sm:$0xf]
    %v2192 = vld [vmem:[#allocation4 + $0x1a4] sm:$0xff]
    %v2193 = vld [vmem:[#allocation4 + $0x1ac] sm:$0xf]
    %v2194 = vld [vmem:[#allocation4 + $0x1b0] sm:$0xff]
    %v2195 = vld [vmem:[#allocation4 + $0x1b8] sm:$0xf]
    %v2196 = vld [vmem:[#allocation4 + $0x1bc] sm:$0xff]
    %v2197 = vld [vmem:[#allocation4 + $0x1c4] sm:$0xf]
    %v2198 = vld [vmem:[#allocation4 + $0x1c8] sm:$0xff]
    %v2199 = vld [vmem:[#allocation4 + $0x1d0] sm:$0xf]
    %v2200 = vld [vmem:[#allocation4 + $0x1d4] sm:$0xff]
    %v2201 = vld [vmem:[#allocation4 + $0x1dc] sm:$0xf]
    %v2202 = vld [vmem:[#allocation4 + $0x1e0] sm:$0xff]
    %v2203 = vld [vmem:[#allocation4 + $0x1e8] sm:$0xf]
    %v2204 = vld [vmem:[#allocation4 + $0x1ec] sm:$0xff]
    %v2205 = vld [vmem:[#allocation4 + $0x1f4] sm:$0xf]
    %v2206 = vld [vmem:[#allocation4 + $0x1f8] sm:$0xff]
    %v2207 = vld [vmem:[#allocation4 + $0x200] sm:$0xf]
    %v2208 = vld [vmem:[#allocation4 + $0x204] sm:$0xff]
    %v2209 = vld [vmem:[#allocation4 + $0x20c] sm:$0xf]
    %v2210 = vld [vmem:[#allocation4 + $0x210] sm:$0xff]
    %v2211 = vld [vmem:[#allocation4 + $0x218] sm:$0xf]
    %v2212 = vld [vmem:[#allocation4 + $0x21c] sm:$0xff]
    %v2213 = vld [vmem:[#allocation4 + $0x224] sm:$0xf]
    %v2214 = vld [vmem:[#allocation4 + $0x228] sm:$0xff]
    %v2215 = vld [vmem:[#allocation4 + $0x230] sm:$0xf]
    %v2216 = vld [vmem:[#allocation4 + $0x234] sm:$0xff]
    %v2217 = vld [vmem:[#allocation4 + $0x23c] sm:$0xf]
    %v2218 = vld [vmem:[#allocation4 + $0x240] sm:$0xff]
    %v2219 = vld [vmem:[#allocation4 + $0x248] sm:$0xf]
    %v2220 = vld [vmem:[#allocation4 + $0x24c] sm:$0xff]
    %v2221 = vld [vmem:[#allocation4 + $0x254] sm:$0xf]
    %v2222 = vld [vmem:[#allocation4 + $0x258] sm:$0xff]
    %v2223 = vld [vmem:[#allocation4 + $0x260] sm:$0xf]
    %v2224 = vld [vmem:[#allocation4 + $0x264] sm:$0xff]
    %v2225 = vld [vmem:[#allocation4 + $0x26c] sm:$0xf]
    %v2226 = vld [vmem:[#allocation4 + $0x270] sm:$0xff]
    %v2227 = vld [vmem:[#allocation4 + $0x278] sm:$0xf]
    %v2228 = vld [vmem:[#allocation4 + $0x27c] sm:$0xff]
    %v2229 = vld [vmem:[#allocation4 + $0x284] sm:$0xf]
    %v2230 = vld [vmem:[#allocation4 + $0x288] sm:$0xff]
    %v2231 = vld [vmem:[#allocation4 + $0x290] sm:$0xf]
    %v2232 = vld [vmem:[#allocation4 + $0x294] sm:$0xff]
    %v2233 = vld [vmem:[#allocation4 + $0x29c] sm:$0xf]
    %v2234 = vld [vmem:[#allocation4 + $0x2a0] sm:$0xff]
    %v2235 = vld [vmem:[#allocation4 + $0x2a8] sm:$0xf]
    %v2236 = vld [vmem:[#allocation4 + $0x2ac] sm:$0xff]
    %v2237 = vld [vmem:[#allocation4 + $0x2b4] sm:$0xf]
    %v2238 = vld [vmem:[#allocation4 + $0x2b8] sm:$0xff]
    %v2239 = vld [vmem:[#allocation4 + $0x2c0] sm:$0xf]
    %v2240 = vld [vmem:[#allocation4 + $0x2c4] sm:$0xff]
    %v2241 = vld [vmem:[#allocation4 + $0x2cc] sm:$0xf]
    %v2242 = vld [vmem:[#allocation4 + $0x2d0] sm:$0xff]
    %v2243 = vld [vmem:[#allocation4 + $0x2d8] sm:$0xf]
    %v2244 = vld [vmem:[#allocation4 + $0x2dc] sm:$0xff]
    %v2245 = vld [vmem:[#allocation4 + $0x2e4] sm:$0xf]
    %v2246 = vld [vmem:[#allocation4 + $0x2e8] sm:$0xff]
    %v2247 = vld [vmem:[#allocation4 + $0x2f0] sm:$0xf]
    %v2248 = vld [vmem:[#allocation4 + $0x2f4] sm:$0xff]
    %v2249 = vld [vmem:[#allocation4 + $0x2fc] sm:$0xf]
    %v2250 = vld [vmem:[#allocation4 + $0x300] sm:$0xff]
    %v2251 = vld [vmem:[#allocation4 + $0x308] sm:$0xf]
    %v2252 = vld [vmem:[#allocation4 + $0x30c] sm:$0xff]
    %v2253 = vld [vmem:[#allocation4 + $0x314] sm:$0xf]
    %v2254 = vld [vmem:[#allocation4 + $0x318] sm:$0xff]
    %v2255 = vld [vmem:[#allocation4 + $0x320] sm:$0xf]
    %v2256 = vld [vmem:[#allocation4 + $0x324] sm:$0xff]
    %v2257 = vld [vmem:[#allocation4 + $0x32c] sm:$0xf]
    %v2258 = vld [vmem:[#allocation4 + $0x330] sm:$0xff]
    %v2259 = vld [vmem:[#allocation4 + $0x338] sm:$0xf]
    %v2260 = vld [vmem:[#allocation4 + $0x33c] sm:$0xff]
    %v2261 = vld [vmem:[#allocation4 + $0x344] sm:$0xf]
    %v2262 = vld [vmem:[#allocation4 + $0x348] sm:$0xff]
    %v2263 = vld [vmem:[#allocation4 + $0x350] sm:$0xf]
    %v2264 = vld [vmem:[#allocation4 + $0x354] sm:$0xff]
    %v2265 = vld [vmem:[#allocation4 + $0x35c] sm:$0xf]
    %v2266 = vld [vmem:[#allocation4 + $0x360] sm:$0xff]
    %v2267 = vld [vmem:[#allocation4 + $0x368] sm:$0xf]
    %v2268 = vld [vmem:[#allocation4 + $0x36c] sm:$0xff]
    %v2269 = vld [vmem:[#allocation4 + $0x374] sm:$0xf]
    %v2270 = vld [vmem:[#allocation4 + $0x378] sm:$0xff]
    %v2271 = vld [vmem:[#allocation4 + $0x380] sm:$0xf]
    %v2272 = vld [vmem:[#allocation4 + $0x384] sm:$0xff]
    %v2273 = vld [vmem:[#allocation4 + $0x38c] sm:$0xf]
    %v2274 = vld [vmem:[#allocation4 + $0x390] sm:$0xff]
    %v2275 = vld [vmem:[#allocation4 + $0x398] sm:$0xf]
    %v2276 = vld [vmem:[#allocation4 + $0x39c] sm:$0xff]
    %v2277 = vld [vmem:[#allocation4 + $0x3a4] sm:$0xf]
    %v2278 = vld [vmem:[#allocation4 + $0x3a8] sm:$0xff]
    %v2279 = vld [vmem:[#allocation4 + $0x3b0] sm:$0xf]
    %v2280 = vld [vmem:[#allocation4 + $0x3b4] sm:$0xff]
    %v2281 = vld [vmem:[#allocation4 + $0x3bc] sm:$0xf]
    %v2282 = vld [vmem:[%s4] sm:$0x7]
    %v2284 = vperm.slane %v2282, 0
    %v2285 = vperm.slane %v2282, 1
    %v2286 = vperm.slane %v2282, 2
    %v2450 = vunpack.c.l.b16 %v2122
    %v2451 = vunpack.c.h.b16 %v2122
    %v2452 = vunpack.c.l.b16 %v2123
    %v2453 = vunpack.c.l.b16 %v2124
    %v2454 = vunpack.c.h.b16 %v2124
    %v2455 = vunpack.c.l.b16 %v2125
    %v2456 = vunpack.c.l.b16 %v2126
    %v2457 = vunpack.c.h.b16 %v2126
    %v2458 = vunpack.c.l.b16 %v2127
    %v2459 = vunpack.c.l.b16 %v2128
    %v2460 = vunpack.c.h.b16 %v2128
    %v2461 = vunpack.c.l.b16 %v2129
    %v2462 = vunpack.c.l.b16 %v2130
    %v2463 = vunpack.c.h.b16 %v2130
    %v2464 = vunpack.c.l.b16 %v2131
    %v2465 = vunpack.c.l.b16 %v2132
    %v2466 = vunpack.c.h.b16 %v2132
    %v2467 = vunpack.c.l.b16 %v2133
    %v2468 = vunpack.c.l.b16 %v2134
    %v2469 = vunpack.c.h.b16 %v2134
    %v2470 = vunpack.c.l.b16 %v2135
    %v2471 = vunpack.c.l.b16 %v2136
    %v2472 = vunpack.c.h.b16 %v2136
    %v2473 = vunpack.c.l.b16 %v2137
    %v2474 = vunpack.c.l.b16 %v2138
    %v2475 = vunpack.c.h.b16 %v2138
    %v2476 = vunpack.c.l.b16 %v2139
    %v2477 = vunpack.c.l.b16 %v2140
    %v2478 = vunpack.c.h.b16 %v2140
    %v2479 = vunpack.c.l.b16 %v2141
    %v2480 = vunpack.c.l.b16 %v2142
    %v2481 = vunpack.c.h.b16 %v2142
    %v2482 = vunpack.c.l.b16 %v2143
    %v2483 = vunpack.c.l.b16 %v2144
    %v2484 = vunpack.c.h.b16 %v2144
    %v2485 = vunpack.c.l.b16 %v2145
    %v2486 = vunpack.c.l.b16 %v2146
    %v2487 = vunpack.c.h.b16 %v2146
    %v2488 = vunpack.c.l.b16 %v2147
    %v2489 = vunpack.c.l.b16 %v2148
    %v2490 = vunpack.c.h.b16 %v2148
    %v2491 = vunpack.c.l.b16 %v2149
    %v2492 = vunpack.c.l.b16 %v2150
    %v2493 = vunpack.c.h.b16 %v2150
    %v2494 = vunpack.c.l.b16 %v2151
    %v2495 = vunpack.c.l.b16 %v2152
    %v2496 = vunpack.c.h.b16 %v2152
    %v2497 = vunpack.c.l.b16 %v2153
    %v2498 = vunpack.c.l.b16 %v2154
    %v2499 = vunpack.c.h.b16 %v2154
    %v2500 = vunpack.c.l.b16 %v2155
    %v2501 = vunpack.c.l.b16 %v2156
    %v2502 = vunpack.c.h.b16 %v2156
    %v2503 = vunpack.c.l.b16 %v2157
    %v2504 = vunpack.c.l.b16 %v2158
    %v2505 = vunpack.c.h.b16 %v2158
    %v2506 = vunpack.c.l.b16 %v2159
    %v2507 = vunpack.c.l.b16 %v2160
    %v2508 = vunpack.c.h.b16 %v2160
    %v2509 = vunpack.c.l.b16 %v2161
    %v2510 = vunpack.c.l.b16 %v2162
    %v2511 = vunpack.c.h.b16 %v2162
    %v2512 = vunpack.c.l.b16 %v2163
    %v2513 = vunpack.c.l.b16 %v2164
    %v2514 = vunpack.c.h.b16 %v2164
    %v2515 = vunpack.c.l.b16 %v2165
    %v2516 = vunpack.c.l.b16 %v2166
    %v2517 = vunpack.c.h.b16 %v2166
    %v2518 = vunpack.c.l.b16 %v2167
    %v2519 = vunpack.c.l.b16 %v2168
    %v2520 = vunpack.c.h.b16 %v2168
    %v2521 = vunpack.c.l.b16 %v2169
    %v2522 = vunpack.c.l.b16 %v2170
    %v2523 = vunpack.c.h.b16 %v2170
    %v2524 = vunpack.c.l.b16 %v2171
    %v2525 = vunpack.c.l.b16 %v2172
    %v2526 = vunpack.c.h.b16 %v2172
    %v2527 = vunpack.c.l.b16 %v2173
    %v2528 = vunpack.c.l.b16 %v2174
    %v2529 = vunpack.c.h.b16 %v2174
    %v2530 = vunpack.c.l.b16 %v2175
    %v2531 = vunpack.c.l.b16 %v2176
    %v2532 = vunpack.c.h.b16 %v2176
    %v2533 = vunpack.c.l.b16 %v2177
    %v2534 = vunpack.c.l.b16 %v2178
    %v2535 = vunpack.c.h.b16 %v2178
    %v2536 = vunpack.c.l.b16 %v2179
    %v2537 = vunpack.c.l.b16 %v2180
    %v2538 = vunpack.c.h.b16 %v2180
    %v2539 = vunpack.c.l.b16 %v2181
    %v2540 = vunpack.c.l.b16 %v2182
    %v2541 = vunpack.c.h.b16 %v2182
    %v2542 = vunpack.c.l.b16 %v2183
    %v2543 = vunpack.c.l.b16 %v2184
    %v2544 = vunpack.c.h.b16 %v2184
    %v2545 = vunpack.c.l.b16 %v2185
    %v2546 = vunpack.c.l.b16 %v2186
    %v2547 = vunpack.c.h.b16 %v2186
    %v2548 = vunpack.c.l.b16 %v2187
    %v2549 = vunpack.c.l.b16 %v2188
    %v2550 = vunpack.c.h.b16 %v2188
    %v2551 = vunpack.c.l.b16 %v2189
    %v2552 = vunpack.c.l.b16 %v2190
    %v2553 = vunpack.c.h.b16 %v2190
    %v2554 = vunpack.c.l.b16 %v2191
    %v2555 = vunpack.c.l.b16 %v2192
    %v2556 = vunpack.c.h.b16 %v2192
    %v2557 = vunpack.c.l.b16 %v2193
    %v2558 = vunpack.c.l.b16 %v2194
    %v2559 = vunpack.c.h.b16 %v2194
    %v2560 = vunpack.c.l.b16 %v2195
    %v2561 = vunpack.c.l.b16 %v2196
    %v2562 = vunpack.c.h.b16 %v2196
    %v2563 = vunpack.c.l.b16 %v2197
    %v2564 = vunpack.c.l.b16 %v2198
    %v2565 = vunpack.c.h.b16 %v2198
    %v2566 = vunpack.c.l.b16 %v2199
    %v2567 = vunpack.c.l.b16 %v2200
    %v2568 = vunpack.c.h.b16 %v2200
    %v2569 = vunpack.c.l.b16 %v2201
    %v2570 = vunpack.c.l.b16 %v2202
    %v2571 = vunpack.c.h.b16 %v2202
    %v2572 = vunpack.c.l.b16 %v2203
    %v2573 = vunpack.c.l.b16 %v2204
    %v2574 = vunpack.c.h.b16 %v2204
    %v2575 = vunpack.c.l.b16 %v2205
    %v2576 = vunpack.c.l.b16 %v2206
    %v2577 = vunpack.c.h.b16 %v2206
    %v2578 = vunpack.c.l.b16 %v2207
    %v2579 = vunpack.c.l.b16 %v2208
    %v2580 = vunpack.c.h.b16 %v2208
    %v2581 = vunpack.c.l.b16 %v2209
    %v2582 = vunpack.c.l.b16 %v2210
    %v2583 = vunpack.c.h.b16 %v2210
    %v2584 = vunpack.c.l.b16 %v2211
    %v2585 = vunpack.c.l.b16 %v2212
    %v2586 = vunpack.c.h.b16 %v2212
    %v2587 = vunpack.c.l.b16 %v2213
    %v2588 = vunpack.c.l.b16 %v2214
    %v2589 = vunpack.c.h.b16 %v2214
    %v2590 = vunpack.c.l.b16 %v2215
    %v2591 = vunpack.c.l.b16 %v2216
    %v2592 = vunpack.c.h.b16 %v2216
    %v2593 = vunpack.c.l.b16 %v2217
    %v2594 = vunpack.c.l.b16 %v2218
    %v2595 = vunpack.c.h.b16 %v2218
    %v2596 = vunpack.c.l.b16 %v2219
    %v2597 = vunpack.c.l.b16 %v2220
    %v2598 = vunpack.c.h.b16 %v2220
    %v2599 = vunpack.c.l.b16 %v2221
    %v2600 = vunpack.c.l.b16 %v2222
    %v2601 = vunpack.c.h.b16 %v2222
    %v2602 = vunpack.c.l.b16 %v2223
    %v2603 = vunpack.c.l.b16 %v2224
    %v2604 = vunpack.c.h.b16 %v2224
    %v2605 = vunpack.c.l.b16 %v2225
    %v2606 = vunpack.c.l.b16 %v2226
    %v2607 = vunpack.c.h.b16 %v2226
    %v2608 = vunpack.c.l.b16 %v2227
    %v2609 = vunpack.c.l.b16 %v2228
    %v2610 = vunpack.c.h.b16 %v2228
    %v2611 = vunpack.c.l.b16 %v2229
    %v2612 = vunpack.c.l.b16 %v2230
    %v2613 = vunpack.c.h.b16 %v2230
    %v2614 = vunpack.c.l.b16 %v2231
    %v2615 = vunpack.c.l.b16 %v2232
    %v2616 = vunpack.c.h.b16 %v2232
    %v2617 = vunpack.c.l.b16 %v2233
    %v2618 = vunpack.c.l.b16 %v2234
    %v2619 = vunpack.c.h.b16 %v2234
    %v2620 = vunpack.c.l.b16 %v2235
    %v2621 = vunpack.c.l.b16 %v2236
    %v2622 = vunpack.c.h.b16 %v2236
    %v2623 = vunpack.c.l.b16 %v2237
    %v2624 = vunpack.c.l.b16 %v2238
    %v2625 = vunpack.c.h.b16 %v2238
    %v2626 = vunpack.c.l.b16 %v2239
    %v2627 = vunpack.c.l.b16 %v2240
    %v2628 = vunpack.c.h.b16 %v2240
    %v2629 = vunpack.c.l.b16 %v2241
    %v2630 = vunpack.c.l.b16 %v2242
    %v2631 = vunpack.c.h.b16 %v2242
    %v2632 = vunpack.c.l.b16 %v2243
    %v2633 = vunpack.c.l.b16 %v2244
    %v2634 = vunpack.c.h.b16 %v2244
    %v2635 = vunpack.c.l.b16 %v2245
    %v2636 = vunpack.c.l.b16 %v2246
    %v2637 = vunpack.c.h.b16 %v2246
    %v2638 = vunpack.c.l.b16 %v2247
    %v2639 = vunpack.c.l.b16 %v2248
    %v2640 = vunpack.c.h.b16 %v2248
    %v2641 = vunpack.c.l.b16 %v2249
    %v2642 = vunpack.c.l.b16 %v2250
    %v2643 = vunpack.c.h.b16 %v2250
    %v2644 = vunpack.c.l.b16 %v2251
    %v2645 = vunpack.c.l.b16 %v2252
    %v2646 = vunpack.c.h.b16 %v2252
    %v2647 = vunpack.c.l.b16 %v2253
    %v2648 = vunpack.c.l.b16 %v2254
    %v2649 = vunpack.c.h.b16 %v2254
    %v2650 = vunpack.c.l.b16 %v2255
    %v2651 = vunpack.c.l.b16 %v2256
    %v2652 = vunpack.c.h.b16 %v2256
    %v2653 = vunpack.c.l.b16 %v2257
    %v2654 = vunpack.c.l.b16 %v2258
    %v2655 = vunpack.c.h.b16 %v2258
    %v2656 = vunpack.c.l.b16 %v2259
    %v2657 = vunpack.c.l.b16 %v2260
    %v2658 = vunpack.c.h.b16 %v2260
    %v2659 = vunpack.c.l.b16 %v2261
    %v2660 = vunpack.c.l.b16 %v2262
    %v2661 = vunpack.c.h.b16 %v2262
    %v2662 = vunpack.c.l.b16 %v2263
    %v2663 = vunpack.c.l.b16 %v2264
    %v2664 = vunpack.c.h.b16 %v2264
    %v2665 = vunpack.c.l.b16 %v2265
    %v2666 = vunpack.c.l.b16 %v2266
    %v2667 = vunpack.c.h.b16 %v2266
    %v2668 = vunpack.c.l.b16 %v2267
    %v2669 = vunpack.c.l.b16 %v2268
    %v2670 = vunpack.c.h.b16 %v2268
    %v2671 = vunpack.c.l.b16 %v2269
    %v2672 = vunpack.c.l.b16 %v2270
    %v2673 = vunpack.c.h.b16 %v2270
    %v2674 = vunpack.c.l.b16 %v2271
    %v2675 = vunpack.c.l.b16 %v2272
    %v2676 = vunpack.c.h.b16 %v2272
    %v2677 = vunpack.c.l.b16 %v2273
    %v2678 = vunpack.c.l.b16 %v2274
    %v2679 = vunpack.c.h.b16 %v2274
    %v2680 = vunpack.c.l.b16 %v2275
    %v2681 = vunpack.c.l.b16 %v2276
    %v2682 = vunpack.c.h.b16 %v2276
    %v2683 = vunpack.c.l.b16 %v2277
    %v2684 = vunpack.c.l.b16 %v2278
    %v2685 = vunpack.c.h.b16 %v2278
    %v2686 = vunpack.c.l.b16 %v2279
    %v2687 = vunpack.c.l.b16 %v2280
    %v2688 = vunpack.c.h.b16 %v2280
    %v2689 = vunpack.c.l.b16 %v2281
    %v2690 = vpack.c.b16 %v2453, %v2450
    %v2691 = vpack.c.b16 %v2454, %v2451
    %v2692 = vpack.c.b16 %v2455, %v2452
    %v2693 = vpack.c.b16 %v2459, %v2456
    %v2694 = vpack.c.b16 %v2460, %v2457
    %v2695 = vpack.c.b16 %v2461, %v2458
    %v2696 = vpack.c.b16 %v2465, %v2462
    %v2697 = vpack.c.b16 %v2466, %v2463
    %v2698 = vpack.c.b16 %v2467, %v2464
    %v2699 = vpack.c.b16 %v2471, %v2468
    %v2700 = vpack.c.b16 %v2472, %v2469
    %v2701 = vpack.c.b16 %v2473, %v2470
    %v2702 = vpack.c.b16 %v2477, %v2474
    %v2703 = vpack.c.b16 %v2478, %v2475
    %v2704 = vpack.c.b16 %v2479, %v2476
    %v2705 = vpack.c.b16 %v2483, %v2480
    %v2706 = vpack.c.b16 %v2484, %v2481
    %v2707 = vpack.c.b16 %v2485, %v2482
    %v2708 = vpack.c.b16 %v2489, %v2486
    %v2709 = vpack.c.b16 %v2490, %v2487
    %v2710 = vpack.c.b16 %v2491, %v2488
    %v2711 = vpack.c.b16 %v2495, %v2492
    %v2712 = vpack.c.b16 %v2496, %v2493
    %v2713 = vpack.c.b16 %v2497, %v2494
    %v2714 = vpack.c.b16 %v2501, %v2498
    %v2715 = vpack.c.b16 %v2502, %v2499
    %v2716 = vpack.c.b16 %v2503, %v2500
    %v2717 = vpack.c.b16 %v2507, %v2504
    %v2718 = vpack.c.b16 %v2508, %v2505
    %v2719 = vpack.c.b16 %v2509, %v2506
    %v2720 = vpack.c.b16 %v2513, %v2510
    %v2721 = vpack.c.b16 %v2514, %v2511
    %v2722 = vpack.c.b16 %v2515, %v2512
    %v2723 = vpack.c.b16 %v2519, %v2516
    %v2724 = vpack.c.b16 %v2520, %v2517
    %v2725 = vpack.c.b16 %v2521, %v2518
    %v2726 = vpack.c.b16 %v2525, %v2522
    %v2727 = vpack.c.b16 %v2526, %v2523
    %v2728 = vpack.c.b16 %v2527, %v2524
    %v2729 = vpack.c.b16 %v2531, %v2528
    %v2730 = vpack.c.b16 %v2532, %v2529
    %v2731 = vpack.c.b16 %v2533, %v2530
    %v2732 = vpack.c.b16 %v2537, %v2534
    %v2733 = vpack.c.b16 %v2538, %v2535
    %v2734 = vpack.c.b16 %v2539, %v2536
    %v2735 = vpack.c.b16 %v2543, %v2540
    %v2736 = vpack.c.b16 %v2544, %v2541
    %v2737 = vpack.c.b16 %v2545, %v2542
    %v2738 = vpack.c.b16 %v2549, %v2546
    %v2739 = vpack.c.b16 %v2550, %v2547
    %v2740 = vpack.c.b16 %v2551, %v2548
    %v2741 = vpack.c.b16 %v2555, %v2552
    %v2742 = vpack.c.b16 %v2556, %v2553
    %v2743 = vpack.c.b16 %v2557, %v2554
    %v2744 = vpack.c.b16 %v2561, %v2558
    %v2745 = vpack.c.b16 %v2562, %v2559
    %v2746 = vpack.c.b16 %v2563, %v2560
    %v2747 = vpack.c.b16 %v2567, %v2564
    %v2748 = vpack.c.b16 %v2568, %v2565
    %v2749 = vpack.c.b16 %v2569, %v2566
    %v2750 = vpack.c.b16 %v2573, %v2570
    %v2751 = vpack.c.b16 %v2574, %v2571
    %v2752 = vpack.c.b16 %v2575, %v2572
    %v2753 = vpack.c.b16 %v2579, %v2576
    %v2754 = vpack.c.b16 %v2580, %v2577
    %v2755 = vpack.c.b16 %v2581, %v2578
    %v2756 = vpack.c.b16 %v2585, %v2582
    %v2757 = vpack.c.b16 %v2586, %v2583
    %v2758 = vpack.c.b16 %v2587, %v2584
    %v2759 = vpack.c.b16 %v2591, %v2588
    %v2760 = vpack.c.b16 %v2592, %v2589
    %v2761 = vpack.c.b16 %v2593, %v2590
    %v2762 = vpack.c.b16 %v2597, %v2594
    %v2763 = vpack.c.b16 %v2598, %v2595
    %v2764 = vpack.c.b16 %v2599, %v2596
    %v2765 = vpack.c.b16 %v2603, %v2600
    %v2766 = vpack.c.b16 %v2604, %v2601
    %v2767 = vpack.c.b16 %v2605, %v2602
    %v2768 = vpack.c.b16 %v2609, %v2606
    %v2769 = vpack.c.b16 %v2610, %v2607
    %v2770 = vpack.c.b16 %v2611, %v2608
    %v2771 = vpack.c.b16 %v2615, %v2612
    %v2772 = vpack.c.b16 %v2616, %v2613
    %v2773 = vpack.c.b16 %v2617, %v2614
    %v2774 = vpack.c.b16 %v2621, %v2618
    %v2775 = vpack.c.b16 %v2622, %v2619
    %v2776 = vpack.c.b16 %v2623, %v2620
    %v2777 = vpack.c.b16 %v2627, %v2624
    %v2778 = vpack.c.b16 %v2628, %v2625
    %v2779 = vpack.c.b16 %v2629, %v2626
    %v2780 = vpack.c.b16 %v2633, %v2630
    %v2781 = vpack.c.b16 %v2634, %v2631
    %v2782 = vpack.c.b16 %v2635, %v2632
    %v2783 = vpack.c.b16 %v2639, %v2636
    %v2784 = vpack.c.b16 %v2640, %v2637
    %v2785 = vpack.c.b16 %v2641, %v2638
    %v2786 = vpack.c.b16 %v2645, %v2642
    %v2787 = vpack.c.b16 %v2646, %v2643
    %v2788 = vpack.c.b16 %v2647, %v2644
    %v2789 = vpack.c.b16 %v2651, %v2648
    %v2790 = vpack.c.b16 %v2652, %v2649
    %v2791 = vpack.c.b16 %v2653, %v2650
    %v2792 = vpack.c.b16 %v2657, %v2654
    %v2793 = vpack.c.b16 %v2658, %v2655
    %v2794 = vpack.c.b16 %v2659, %v2656
    %v2795 = vpack.c.b16 %v2663, %v2660
    %v2796 = vpack.c.b16 %v2664, %v2661
    %v2797 = vpack.c.b16 %v2665, %v2662
    %v2798 = vpack.c.b16 %v2669, %v2666
    %v2799 = vpack.c.b16 %v2670, %v2667
    %v2800 = vpack.c.b16 %v2671, %v2668
    %v2801 = vpack.c.b16 %v2675, %v2672
    %v2802 = vpack.c.b16 %v2676, %v2673
    %v2803 = vpack.c.b16 %v2677, %v2674
    %v2804 = vpack.c.b16 %v2681, %v2678
    %v2805 = vpack.c.b16 %v2682, %v2679
    %v2806 = vpack.c.b16 %v2683, %v2680
    %v2807 = vpack.c.b16 %v2687, %v2684
    %v2808 = vpack.c.b16 %v2688, %v2685
    %v2809 = vpack.c.b16 %v2689, %v2686
    %2930 = vmatpush.bf16.msra.mxu0 %v2711
    %2931 = vmatpush.bf16.msra.mxu0 %v2708
    %2932 = vmatpush.bf16.msra.mxu0 %v2705
    %2933 = vmatpush.bf16.msra.mxu0 %v2702
    %2934 = vmatpush.bf16.msra.mxu0 %v2699
    %2935 = vmatpush.bf16.msra.mxu0 %v2696
    %2936 = vmatpush.bf16.msra.mxu0 %v2693
    %2937 = vmatpush.bf16.msra.mxu0 %v2690
    %2938 = vmatmul.bf16.gmra.mxu0 %v2117
    %v2939 = vpop.f32.mrf.mxu0
    %v2940 = vadd.f32 %v2284, %v2939
    %v2941 = vpop.f32.mrf.mxu0
    %2942 = vdwg.mxu0
    %2943 = vmatpush.bf16.msra.mxu0 %v2735
    %2944 = vmatpush.bf16.msra.mxu0 %v2732
    %2945 = vmatpush.bf16.msra.mxu0 %v2729
    %2946 = vmatpush.bf16.msra.mxu0 %v2726
    %2947 = vmatpush.bf16.msra.mxu0 %v2723
    %2948 = vmatpush.bf16.msra.mxu0 %v2720
    %2949 = vmatpush.bf16.msra.mxu0 %v2717
    %2950 = vmatpush.bf16.msra.mxu0 %v2714
    %2951 = vmatmul.bf16.gmra.mxu0 %v2118
    %v2952 = vpop.f32.mrf.mxu0
    %v2953 = vadd.f32 %v2940, %v2952
    %v2954 = vpop.f32.mrf.mxu0
    %2955 = vdwg.mxu0
    %2956 = vmatpush.bf16.msra.mxu0 %v2759
    %2957 = vmatpush.bf16.msra.mxu0 %v2756
    %2958 = vmatpush.bf16.msra.mxu0 %v2753
    %2959 = vmatpush.bf16.msra.mxu0 %v2750
    %2960 = vmatpush.bf16.msra.mxu0 %v2747
    %2961 = vmatpush.bf16.msra.mxu0 %v2744
    %2962 = vmatpush.bf16.msra.mxu0 %v2741
    %2963 = vmatpush.bf16.msra.mxu0 %v2738
    %2964 = vmatmul.bf16.gmra.mxu0 %v2119
    %v2965 = vpop.f32.mrf.mxu0
    %v2966 = vadd.f32 %v2953, %v2965
    %v2967 = vpop.f32.mrf.mxu0
    %2968 = vdwg.mxu0
    %2969 = vmatpush.bf16.msra.mxu0 %v2783
    %2970 = vmatpush.bf16.msra.mxu0 %v2780
    %2971 = vmatpush.bf16.msra.mxu0 %v2777
    %2972 = vmatpush.bf16.msra.mxu0 %v2774
    %2973 = vmatpush.bf16.msra.mxu0 %v2771
    %2974 = vmatpush.bf16.msra.mxu0 %v2768
    %2975 = vmatpush.bf16.msra.mxu0 %v2765
    %2976 = vmatpush.bf16.msra.mxu0 %v2762
    %2977 = vmatmul.bf16.gmra.mxu0 %v2120
    %v2978 = vpop.f32.mrf.mxu0
    %v2979 = vadd.f32 %v2966, %v2978
    %v2980 = vpop.f32.mrf.mxu0
    %2981 = vdwg.mxu0
    %2982 = vmatpush.bf16.msra.mxu0 %v2807
    %2983 = vmatpush.bf16.msra.mxu0 %v2804
    %2984 = vmatpush.bf16.msra.mxu0 %v2801
    %2985 = vmatpush.bf16.msra.mxu0 %v2798
    %2986 = vmatpush.bf16.msra.mxu0 %v2795
    %2987 = vmatpush.bf16.msra.mxu0 %v2792
    %2988 = vmatpush.bf16.msra.mxu0 %v2789
    %2989 = vmatpush.bf16.msra.mxu0 %v2786
    %2990 = vmatmul.bf16.gmra.mxu0 %v2121
    %v2991 = vpop.f32.mrf.mxu0
    %v2992 = vadd.f32 %v2979, %v2991
    %v2993 = vpop.f32.mrf.mxu0
    %2994 = vdwg.mxu0
    %2995 = vmatpush.bf16.msra.mxu0 %v2712
    %2996 = vmatpush.bf16.msra.mxu0 %v2709
    %2997 = vmatpush.bf16.msra.mxu0 %v2706
    %2998 = vmatpush.bf16.msra.mxu0 %v2703
    %2999 = vmatpush.bf16.msra.mxu0 %v2700
    %3000 = vmatpush.bf16.msra.mxu0 %v2697
    %3001 = vmatpush.bf16.msra.mxu0 %v2694
    %3002 = vmatpush.bf16.msra.mxu0 %v2691
    %3003 = vmatmul.bf16.gmra.mxu0 %v2117
    %v3004 = vpop.f32.mrf.mxu0
    %v3005 = vadd.f32 %v2285, %v3004
    %v3006 = vpop.f32.mrf.mxu0
    %3007 = vdwg.mxu0
    %3008 = vmatpush.bf16.msra.mxu0 %v2736
    %3009 = vmatpush.bf16.msra.mxu0 %v2733
    %3010 = vmatpush.bf16.msra.mxu0 %v2730
    %3011 = vmatpush.bf16.msra.mxu0 %v2727
    %3012 = vmatpush.bf16.msra.mxu0 %v2724
    %3013 = vmatpush.bf16.msra.mxu0 %v2721
    %3014 = vmatpush.bf16.msra.mxu0 %v2718
    %3015 = vmatpush.bf16.msra.mxu0 %v2715
    %3016 = vmatmul.bf16.gmra.mxu0 %v2118
    %v3017 = vpop.f32.mrf.mxu0
    %v3018 = vadd.f32 %v3005, %v3017
    %v3019 = vpop.f32.mrf.mxu0
    %3020 = vdwg.mxu0
    %3021 = vmatpush.bf16.msra.mxu0 %v2760
    %3022 = vmatpush.bf16.msra.mxu0 %v2757
    %3023 = vmatpush.bf16.msra.mxu0 %v2754
    %3024 = vmatpush.bf16.msra.mxu0 %v2751
    %3025 = vmatpush.bf16.msra.mxu0 %v2748
    %3026 = vmatpush.bf16.msra.mxu0 %v2745
    %3027 = vmatpush.bf16.msra.mxu0 %v2742
    %3028 = vmatpush.bf16.msra.mxu0 %v2739
    %3029 = vmatmul.bf16.gmra.mxu0 %v2119
    %v3030 = vpop.f32.mrf.mxu0
    %v3031 = vadd.f32 %v3018, %v3030
    %v3032 = vpop.f32.mrf.mxu0
    %3033 = vdwg.mxu0
    %3034 = vmatpush.bf16.msra.mxu0 %v2784
    %3035 = vmatpush.bf16.msra.mxu0 %v2781
    %3036 = vmatpush.bf16.msra.mxu0 %v2778
    %3037 = vmatpush.bf16.msra.mxu0 %v2775
    %3038 = vmatpush.bf16.msra.mxu0 %v2772
    %3039 = vmatpush.bf16.msra.mxu0 %v2769
    %3040 = vmatpush.bf16.msra.mxu0 %v2766
    %3041 = vmatpush.bf16.msra.mxu0 %v2763
    %3042 = vmatmul.bf16.gmra.mxu0 %v2120
    %v3043 = vpop.f32.mrf.mxu0
    %v3044 = vadd.f32 %v3031, %v3043
    %v3045 = vpop.f32.mrf.mxu0
    %3046 = vdwg.mxu0
    %3047 = vmatpush.bf16.msra.mxu0 %v2808
    %3048 = vmatpush.bf16.msra.mxu0 %v2805
    %3049 = vmatpush.bf16.msra.mxu0 %v2802
    %3050 = vmatpush.bf16.msra.mxu0 %v2799
    %3051 = vmatpush.bf16.msra.mxu0 %v2796
    %3052 = vmatpush.bf16.msra.mxu0 %v2793
    %3053 = vmatpush.bf16.msra.mxu0 %v2790
    %3054 = vmatpush.bf16.msra.mxu0 %v2787
    %3055 = vmatmul.bf16.gmra.mxu0 %v2121
    %v3056 = vpop.f32.mrf.mxu0
    %v3057 = vadd.f32 %v3044, %v3056
    %v3058 = vpop.f32.mrf.mxu0
    %3059 = vdwg.mxu0
    %3060 = vmatpush.bf16.msra.mxu0 %v2713
    %3061 = vmatpush.bf16.msra.mxu0 %v2710
    %3062 = vmatpush.bf16.msra.mxu0 %v2707
    %3063 = vmatpush.bf16.msra.mxu0 %v2704
    %3064 = vmatpush.bf16.msra.mxu0 %v2701
    %3065 = vmatpush.bf16.msra.mxu0 %v2698
    %3066 = vmatpush.bf16.msra.mxu0 %v2695
    %3067 = vmatpush.bf16.msra.mxu0 %v2692
    %3068 = vmatmul.bf16.gmra.mxu0 %v2117
    %v3069 = vpop.f32.mrf.mxu0
    %v3070 = vadd.f32 %v2286, %v3069
    %v3071 = vpop.f32.mrf.mxu0
    %3072 = vdwg.mxu0
    %3073 = vmatpush.bf16.msra.mxu0 %v2737
    %3074 = vmatpush.bf16.msra.mxu0 %v2734
    %3075 = vmatpush.bf16.msra.mxu0 %v2731
    %3076 = vmatpush.bf16.msra.mxu0 %v2728
    %3077 = vmatpush.bf16.msra.mxu0 %v2725
    %3078 = vmatpush.bf16.msra.mxu0 %v2722
    %3079 = vmatpush.bf16.msra.mxu0 %v2719
    %3080 = vmatpush.bf16.msra.mxu0 %v2716
    %3081 = vmatmul.bf16.gmra.mxu0 %v2118
    %v3082 = vpop.f32.mrf.mxu0
    %v3083 = vadd.f32 %v3070, %v3082
    %v3084 = vpop.f32.mrf.mxu0
    %3085 = vdwg.mxu0
    %3086 = vmatpush.bf16.msra.mxu0 %v2761
    %3087 = vmatpush.bf16.msra.mxu0 %v2758
    %3088 = vmatpush.bf16.msra.mxu0 %v2755
    %3089 = vmatpush.bf16.msra.mxu0 %v2752
    %3090 = vmatpush.bf16.msra.mxu0 %v2749
    %3091 = vmatpush.bf16.msra.mxu0 %v2746
    %3092 = vmatpush.bf16.msra.mxu0 %v2743
    %3093 = vmatpush.bf16.msra.mxu0 %v2740
    %3094 = vmatmul.bf16.gmra.mxu0 %v2119
    %v3095 = vpop.f32.mrf.mxu0
    %v3096 = vadd.f32 %v3083, %v3095
    %v3097 = vpop.f32.mrf.mxu0
    %3098 = vdwg.mxu0
    %3099 = vmatpush.bf16.msra.mxu0 %v2785
    %3100 = vmatpush.bf16.msra.mxu0 %v2782
    %3101 = vmatpush.bf16.msra.mxu0 %v2779
    %3102 = vmatpush.bf16.msra.mxu0 %v2776
    %3103 = vmatpush.bf16.msra.mxu0 %v2773
    %3104 = vmatpush.bf16.msra.mxu0 %v2770
    %3105 = vmatpush.bf16.msra.mxu0 %v2767
    %3106 = vmatpush.bf16.msra.mxu0 %v2764
    %3107 = vmatmul.bf16.gmra.mxu0 %v2120
    %v3108 = vpop.f32.mrf.mxu0
    %v3109 = vadd.f32 %v3096, %v3108
    %v3110 = vpop.f32.mrf.mxu0
    %3111 = vdwg.mxu0
    %3112 = vmatpush.bf16.msra.mxu0 %v2809
    %3113 = vmatpush.bf16.msra.mxu0 %v2806
    %3114 = vmatpush.bf16.msra.mxu0 %v2803
    %3115 = vmatpush.bf16.msra.mxu0 %v2800
    %3116 = vmatpush.bf16.msra.mxu0 %v2797
    %3117 = vmatpush.bf16.msra.mxu0 %v2794
    %3118 = vmatpush.bf16.msra.mxu0 %v2791
    %3119 = vmatpush.bf16.msra.mxu0 %v2788
    %3120 = vmatmul.bf16.gmra.mxu0 %v2121
    %v3121 = vpop.f32.mrf.mxu0
    %v3122 = vadd.f32 %v3109, %v3121
    %v3123 = vpop.f32.mrf.mxu0
    %3124 = vdwg.mxu0
    %v3125 = vmax.f32 %v2992, 0.0
    %v3126 = vmax.f32 %v3057, 0.0
    %v3127 = vmax.f32 %v3122, 0.0
    %v3128 = vpack.c.bf16 %v3125, %v3125
    %v3129 = vpack.c.bf16 %v3126, %v3126
    %v3130 = vpack.c.bf16 %v3127, %v3127
    %v3131 = vld [vmem:[%s5] sm:$0xf]
    %v3132 = vld [vmem:[%s5 + $0x4] sm:$0xf]
    %v3133 = vld [vmem:[%s5 + $0x8] sm:$0xf]
    %v3134 = vld [vmem:[%s5 + $0xc] sm:$0xf]
    %v3135 = vld [vmem:[%s5 + $0x10] sm:$0xf]
    %v3136 = vld [vmem:[%s5 + $0x14] sm:$0xf]
    %v3137 = vld [vmem:[%s5 + $0x18] sm:$0xf]
    %v3138 = vld [vmem:[%s5 + $0x1c] sm:$0xf]
    %v3139 = vld [vmem:[%s5 + $0x20] sm:$0xf]
    %v3140 = vld [vmem:[%s5 + $0x24] sm:$0xf]
    %v3141 = vld [vmem:[%s5 + $0x28] sm:$0xf]
    %v3142 = vld [vmem:[%s5 + $0x2c] sm:$0xf]
    %v3143 = vld [vmem:[%s5 + $0x30] sm:$0xf]
    %v3144 = vld [vmem:[%s5 + $0x34] sm:$0xf]
    %v3145 = vld [vmem:[%s5 + $0x38] sm:$0xf]
    %v3146 = vld [vmem:[%s5 + $0x3c] sm:$0xf]
    %v3147 = vld [vmem:[%s5 + $0x40] sm:$0xf]
    %v3148 = vld [vmem:[%s5 + $0x44] sm:$0xf]
    %v3149 = vld [vmem:[%s5 + $0x48] sm:$0xf]
    %v3150 = vld [vmem:[%s5 + $0x4c] sm:$0xf]
    %v3151 = vld [vmem:[%s5 + $0x50] sm:$0xf]
    %v3152 = vld [vmem:[%s5 + $0x54] sm:$0xf]
    %v3153 = vld [vmem:[%s5 + $0x58] sm:$0xf]
    %v3154 = vld [vmem:[%s5 + $0x5c] sm:$0xf]
    %v3155 = vld [vmem:[%s5 + $0x60] sm:$0xf]
    %v3156 = vld [vmem:[%s5 + $0x64] sm:$0xf]
    %v3157 = vld [vmem:[%s5 + $0x68] sm:$0xf]
    %v3158 = vld [vmem:[%s5 + $0x6c] sm:$0xf]
    %v3159 = vld [vmem:[%s5 + $0x70] sm:$0xf]
    %v3160 = vld [vmem:[%s5 + $0x74] sm:$0xf]
    %v3161 = vld [vmem:[%s5 + $0x78] sm:$0xf]
    %v3162 = vld [vmem:[%s5 + $0x7c] sm:$0xf]
    %v3163 = vld [vmem:[%s5 + $0x80] sm:$0xf]
    %v3164 = vld [vmem:[%s5 + $0x84] sm:$0xf]
    %v3165 = vld [vmem:[%s5 + $0x88] sm:$0xf]
    %v3166 = vld [vmem:[%s5 + $0x8c] sm:$0xf]
    %v3167 = vld [vmem:[%s5 + $0x90] sm:$0xf]
    %v3168 = vld [vmem:[%s5 + $0x94] sm:$0xf]
    %v3169 = vld [vmem:[%s5 + $0x98] sm:$0xf]
    %v3170 = vld [vmem:[%s5 + $0x9c] sm:$0xf]
    %v3171 = vld [vmem:[%s5 + $0xa0] sm:$0xf]
    %v3172 = vld [vmem:[%s5 + $0xa4] sm:$0xf]
    %v3173 = vld [vmem:[%s5 + $0xa8] sm:$0xf]
    %v3174 = vld [vmem:[%s5 + $0xac] sm:$0xf]
    %v3175 = vld [vmem:[%s5 + $0xb0] sm:$0xf]
    %v3176 = vld [vmem:[%s5 + $0xb4] sm:$0xf]
    %v3177 = vld [vmem:[%s5 + $0xb8] sm:$0xf]
    %v3178 = vld [vmem:[%s5 + $0xbc] sm:$0xf]
    %v3179 = vld [vmem:[%s6] sm:$0x1]
    %v3181 = vperm.slane %v3179, 0
    %v3231 = vunpack.c.l.b16 %v3131
    %v3232 = vunpack.c.l.b16 %v3132
    %v3233 = vunpack.c.l.b16 %v3133
    %v3234 = vunpack.c.l.b16 %v3134
    %v3235 = vunpack.c.l.b16 %v3135
    %v3236 = vunpack.c.l.b16 %v3136
    %v3237 = vunpack.c.l.b16 %v3137
    %v3238 = vunpack.c.l.b16 %v3138
    %v3239 = vunpack.c.l.b16 %v3139
    %v3240 = vunpack.c.l.b16 %v3140
    %v3241 = vunpack.c.l.b16 %v3141
    %v3242 = vunpack.c.l.b16 %v3142
    %v3243 = vunpack.c.l.b16 %v3143
    %v3244 = vunpack.c.l.b16 %v3144
    %v3245 = vunpack.c.l.b16 %v3145
    %v3246 = vunpack.c.l.b16 %v3146
    %v3247 = vunpack.c.l.b16 %v3147
    %v3248 = vunpack.c.l.b16 %v3148
    %v3249 = vunpack.c.l.b16 %v3149
    %v3250 = vunpack.c.l.b16 %v3150
    %v3251 = vunpack.c.l.b16 %v3151
    %v3252 = vunpack.c.l.b16 %v3152
    %v3253 = vunpack.c.l.b16 %v3153
    %v3254 = vunpack.c.l.b16 %v3154
    %v3255 = vunpack.c.l.b16 %v3155
    %v3256 = vunpack.c.l.b16 %v3156
    %v3257 = vunpack.c.l.b16 %v3157
    %v3258 = vunpack.c.l.b16 %v3158
    %v3259 = vunpack.c.l.b16 %v3159
    %v3260 = vunpack.c.l.b16 %v3160
    %v3261 = vunpack.c.l.b16 %v3161
    %v3262 = vunpack.c.l.b16 %v3162
    %v3263 = vunpack.c.l.b16 %v3163
    %v3264 = vunpack.c.l.b16 %v3164
    %v3265 = vunpack.c.l.b16 %v3165
    %v3266 = vunpack.c.l.b16 %v3166
    %v3267 = vunpack.c.l.b16 %v3167
    %v3268 = vunpack.c.l.b16 %v3168
    %v3269 = vunpack.c.l.b16 %v3169
    %v3270 = vunpack.c.l.b16 %v3170
    %v3271 = vunpack.c.l.b16 %v3171
    %v3272 = vunpack.c.l.b16 %v3172
    %v3273 = vunpack.c.l.b16 %v3173
    %v3274 = vunpack.c.l.b16 %v3174
    %v3275 = vunpack.c.l.b16 %v3175
    %v3276 = vunpack.c.l.b16 %v3176
    %v3277 = vunpack.c.l.b16 %v3177
    %v3278 = vunpack.c.l.b16 %v3178
    %v3279 = vpack.c.b16 %v3232, %v3231
    %v3280 = vpack.c.b16 %v3234, %v3233
    %v3281 = vpack.c.b16 %v3236, %v3235
    %v3282 = vpack.c.b16 %v3238, %v3237
    %v3283 = vpack.c.b16 %v3240, %v3239
    %v3284 = vpack.c.b16 %v3242, %v3241
    %v3285 = vpack.c.b16 %v3244, %v3243
    %v3286 = vpack.c.b16 %v3246, %v3245
    %v3287 = vpack.c.b16 %v3248, %v3247
    %v3288 = vpack.c.b16 %v3250, %v3249
    %v3289 = vpack.c.b16 %v3252, %v3251
    %v3290 = vpack.c.b16 %v3254, %v3253
    %v3291 = vpack.c.b16 %v3256, %v3255
    %v3292 = vpack.c.b16 %v3258, %v3257
    %v3293 = vpack.c.b16 %v3260, %v3259
    %v3294 = vpack.c.b16 %v3262, %v3261
    %v3295 = vpack.c.b16 %v3264, %v3263
    %v3296 = vpack.c.b16 %v3266, %v3265
    %v3297 = vpack.c.b16 %v3268, %v3267
    %v3298 = vpack.c.b16 %v3270, %v3269
    %v3299 = vpack.c.b16 %v3272, %v3271
    %v3300 = vpack.c.b16 %v3274, %v3273
    %v3301 = vpack.c.b16 %v3276, %v3275
    %v3302 = vpack.c.b16 %v3278, %v3277
    %3327 = vmatpush.bf16.msra.mxu0 %v3286
    %3328 = vmatpush.bf16.msra.mxu0 %v3285
    %3329 = vmatpush.bf16.msra.mxu0 %v3284
    %3330 = vmatpush.bf16.msra.mxu0 %v3283
    %3331 = vmatpush.bf16.msra.mxu0 %v3282
    %3332 = vmatpush.bf16.msra.mxu0 %v3281
    %3333 = vmatpush.bf16.msra.mxu0 %v3280
    %3334 = vmatpush.bf16.msra.mxu0 %v3279
    %3335 = vmatmul.bf16.gmra.mxu0 %v3128
    %v3336 = vpop.f32.mrf.mxu0
    %v3337 = vadd.f32 %v3181, %v3336
    %v3338 = vpop.f32.mrf.mxu0
    %3339 = vdwg.mxu0
    %3340 = vmatpush.bf16.msra.mxu0 %v3294
    %3341 = vmatpush.bf16.msra.mxu0 %v3293
    %3342 = vmatpush.bf16.msra.mxu0 %v3292
    %3343 = vmatpush.bf16.msra.mxu0 %v3291
    %3344 = vmatpush.bf16.msra.mxu0 %v3290
    %3345 = vmatpush.bf16.msra.mxu0 %v3289
    %3346 = vmatpush.bf16.msra.mxu0 %v3288
    %3347 = vmatpush.bf16.msra.mxu0 %v3287
    %3348 = vmatmul.bf16.gmra.mxu0 %v3129
    %v3349 = vpop.f32.mrf.mxu0
    %v3350 = vadd.f32 %v3337, %v3349
    %v3351 = vpop.f32.mrf.mxu0
    %3352 = vdwg.mxu0
    %3353 = vmatpush.bf16.msra.mxu0 %v3302
    %3354 = vmatpush.bf16.msra.mxu0 %v3301
    %3355 = vmatpush.bf16.msra.mxu0 %v3300
    %3356 = vmatpush.bf16.msra.mxu0 %v3299
    %3357 = vmatpush.bf16.msra.mxu0 %v3298
    %3358 = vmatpush.bf16.msra.mxu0 %v3297
    %3359 = vmatpush.bf16.msra.mxu0 %v3296
    %3360 = vmatpush.bf16.msra.mxu0 %v3295
    %3361 = vmatmul.bf16.gmra.mxu0 %v3130
    %v3362 = vpop.f32.mrf.mxu0
    %v3363 = vadd.f32 %v3350, %v3362
    %v3364 = vpop.f32.mrf.mxu0
    %3365 = vdwg.mxu0
    %v3366 = vpack.c.bf16 %v3363, %v3363
    %3367 = vst [vmem:[%s7] sm:$0xf] %v3366
    // Predicated region
    $region38: #{perceptron_600_300_forward.1} parent=1 // pred_check
      _
    $region39: #{perceptron_600_300_forward.1} parent=1 // pred_check_branch
      %3369 = sbr.rel (0) target = $region41
    $region40: #{perceptron_600_300_forward.1} parent=1 // pred_region
      _
    $region41: #{perceptron_600_300_forward.1} parent=1 // pred_fallthru
      _
    // Predicated region
    $region42: #{perceptron_600_300_forward.1} parent=1 // pred_check
      _
    $region43: #{perceptron_600_300_forward.1} parent=1 // pred_check_branch
      %3371 = sbr.rel (0) target = $region45
    $region44: #{perceptron_600_300_forward.1} parent=1 // pred_region
      _
    $region45: #{perceptron_600_300_forward.1} parent=1 // pred_fallthru
      _
    %3372 = vsyncpa [#allocation3], 1
    %3373 = vsyncpa [#allocation5], 1

</llo_original>
